<compile_context>
chip_gen: v7x
topology: tpu7x:2x2x1
jax: 0.10.0
libtpu: 0.0.40
codegen_flags: <defaults>
</compile_context>

<pallas_src>
import functools

import numpy as np

import jax
import jax.numpy as jnp
from jax.experimental import pallas as pl
from jax.experimental.pallas import tpu as pltpu

PAD = 5                     # max dilation -> single shared row pad
DILATIONS = (1, 3, 5)


# --------------------------- fused block kernel ------------------------------

def dense_block_kernel(xpad_ref, *refs, H, W, C0, Co, num_layers, ys_taps):
    """Whole DenseBlock for one batch element.

    xpad_ref : [1, Hp, W*C0]  bf16   (row-padded input, (w,c) flattened)
    refs     : tapw_0..tapw_{L-1}  [T, W*Cin_l, W*Co]  bf16  (T unique row taps)
               bias_0..bias_{L-1}  [1, W*Co]           f32   (folded biases)
               out                 [1, H, L*W*Co]      f32   (lane-dense slab)
               scratch             [Hp, W*(C0+(L-1)*Co)]  bf16
    """
    L = num_layers
    w_refs = refs[:L]
    b_refs = refs[L:2 * L]
    out_ref = refs[2 * L]
    scr = refs[2 * L + 1]
    WCo = W * Co

    # Zero the scratch (gives the zero row-halo for channel groups produced
    # in-kernel), then drop in the row-padded input group.  Cheap (~13 KB).
    scr[...] = jnp.zeros_like(scr)
    scr[:, 0:W * C0] = xpad_ref[0]

    k = W * C0                        # scratch lanes populated so far
    for l in range(L):
        # Bias-initialized f32 accumulator (bias already folded through the
        # 1x1 conv on the host).
        acc = jnp.broadcast_to(b_refs[l][...], (H, WCo)).astype(jnp.float32)
        # T taps = unique row offsets of (dilation, ky); kx shifts and the
        # width zero-padding are pre-folded into each tap matrix, and taps
        # sharing a row offset are pre-summed, so a layer is T matmuls of
        # [H, W*Cin] x [W*Cin, W*Co] with f32 accumulation on the MXU.
        for t, ys in enumerate(ys_taps):
            acc = acc + jnp.dot(scr[ys:ys + H, 0:k], w_refs[l][t],
                                preferred_element_type=jnp.float32)
        # TODO(synk): Dropout2d(0.2) after each dilated conv is identity here
        # (inference semantics); training-mode channel dropout not modeled.
        out_ref[0, :, l * WCo:(l + 1) * WCo] = acc.astype(out_ref.dtype)
        if l + 1 < L:
            # Append this layer's output as a new channel group of the scratch
            # (interior rows only; halo rows stay zero => conv zero padding).
            scr[PAD:PAD + H, k:k + WCo] = acc.astype(scr.dtype)
            k += WCo


# ---------------------- host-side weight folding -----------------------------

def _fold_layer_params(params, W, group_sizes):
    """Fold (3 dilated 3x3 convs) + concat + (1x1 conv) into T tap matrices.

    group_sizes: channel counts of the input groups as laid out in the kernel
      scratch, e.g. [C0] for layer 0, [C0, 3G] for layer 1, ...

    Returns
      tapw : [T, W*Cin, W*Co] bf16   (T = #unique row offsets; kx shifts and
                                      width zero-padding folded in; taps with
                                      equal row offset summed)
      bias : [1, W*Co]        f32    (bd folded through wo, plus bo)
      ys   : tuple of T row offsets into the row-padded scratch
    """
    wd = np.asarray(params["wd"], np.float32)     # [3, 3, 3, Cin, G]
    bd = np.asarray(params["bd"], np.float32)     # [3, G]
    wo = np.asarray(params["wo"], np.float32)     # [3G, 3G]  (in, out)
    bo = np.asarray(params["bo"], np.float32)     # [1, 3G]
    Cin, G = wd.shape[3], wd.shape[4]
    Co = 3 * G
    assert Cin == sum(group_sizes)

    wo3 = wo.reshape(3, G, Co)
    # cat([a1,a2,a3]) @ wo == sum_d a_d @ wo_d  ->  compose 3x3 weights with wo_d.
    weff = np.einsum("dyxcg,dgo->dyxco", wd, wo3)        # [3,3,3,Cin,Co]
    beff = bo[0] + np.einsum("dg,dgo->o", bd, wo3)       # [Co]

    # Unique row offsets (ky direction) in the row-padded scratch.
    ys_vals = tuple(sorted({PAD + (ky - 1) * d
                            for d in DILATIONS for ky in range(3)}))
    ys_index = {ys: i for i, ys in enumerate(ys_vals)}

    # Base lane offsets of each channel group along the contraction axis
    # (scratch layout: groups concatenated, each (w, c)-flattened).
    group_bases, base = [], 0
    for Cg in group_sizes:
        group_bases.append(base)
        base += W * Cg
    K = base

    tapw = np.zeros((len(ys_vals), K, W * Co), np.float32)
    for di, d in enumerate(DILATIONS):
        for ky in range(3):
            t = ys_index[PAD + (ky - 1) * d]
            for kx in range(3):
                for w in range(W):
                    x = w + (kx - 1) * d
                    if 0 <= x < W:                       # else: zero padding
                        c_lo = 0
                        for gbase, Cg in zip(group_bases, group_sizes):
                            tapw[t, gbase + x * Cg:gbase + (x + 1) * Cg,
                                 w * Co:(w + 1) * Co] += \
                                weff[di, ky, kx, c_lo:c_lo + Cg, :]
                            c_lo += Cg

    bias = np.tile(beff, W)[None, :]                     # [1, W*Co]
    return (jnp.asarray(tapw, jnp.bfloat16),
            jnp.asarray(bias, jnp.float32),
            ys_vals)


# ------------------------------ wrapper ---------------------------------------

def dense_block_apply(x_nchw, block_params):
    """DenseBlock forward. x_nchw: [B, C, H, W] -> [B, C + 3*G*L, H, W]."""
    x_nhwc = jnp.transpose(x_nchw, (0, 2, 3, 1))          # NCHW -> NHWC
    B, H, W, C0 = x_nhwc.shape
    G = block_params[0]["bd"].shape[1]
    Co = 3 * G
    L = len(block_params)
    Hp = H + 2 * PAD
    WCo = W * Co

    # Row-pad only (kx / width padding is folded into the tap weights),
    # flattened to the (w, c)-in-lanes layout used by the kernel, cast to bf16.
    xpad = jnp.pad(x_nhwc, ((0, 0), (PAD, PAD), (0, 0), (0, 0)))
    xpad = xpad.reshape(B, Hp, W * C0).astype(jnp.bfloat16)

    tap_ws, biases, ys_taps = [], [], None
    for l, p in enumerate(block_params):
        tw, bb, ys = _fold_layer_params(p, W=W, group_sizes=[C0] + [Co] * l)
        tap_ws.append(tw)
        biases.append(bb)
        ys_taps = ys

    kernel = functools.partial(
        dense_block_kernel, H=H, W=W, C0=C0, Co=Co, num_layers=L,
        ys_taps=ys_taps)

    out = pl.pallas_call(
        kernel,
        out_shape=jax.ShapeDtypeStruct((B, H, L * WCo), jnp.float32),
        grid=(B,),
        in_specs=(
            [pl.BlockSpec((1, Hp, W * C0), lambda b: (b, 0, 0))]
            + [pl.BlockSpec(tw.shape, lambda b: (0, 0, 0)) for tw in tap_ws]
            + [pl.BlockSpec(bb.shape, lambda b: (0, 0)) for bb in biases]),
        out_specs=pl.BlockSpec((1, H, L * WCo), lambda b: (b, 0, 0)),
        scratch_shapes=[pltpu.VMEM((Hp, W * (C0 + (L - 1) * Co)),
                                   jnp.bfloat16)],
        compiler_params=pltpu.CompilerParams(
            dimension_semantics=("parallel",)),
    )(xpad, *tap_ws, *biases)

    # [B, H, L*W*Co] -> per-layer NHWC feature maps, then final dense concat.
    outs = (out.reshape(B, H, L, W, Co)
               .transpose(0, 1, 3, 2, 4)
               .reshape(B, H, W, L * Co))
    y = jnp.concatenate([x_nhwc, outs], axis=-1)          # [x, out_0, ..., out_{L-1}]
    return jnp.transpose(y, (0, 3, 1, 2))                 # NHWC -> NCHW


# ---------------- deterministic parameter construction -----------------------

def init_dense_layer(key, in_size, growth_rate):
    k1, k2, k3, k4 = jax.random.split(key, 4)
    scale3 = 1.0 / jnp.sqrt(9.0 * in_size)
    scale1 = 1.0 / jnp.sqrt(3.0 * growth_rate)
    return {
        # [dilation, ky, kx, Cin, G]
        "wd": scale3 * jax.random.normal(
            k1, (3, 3, 3, in_size, growth_rate), jnp.float32),
        "bd": scale3 * jax.random.normal(k2, (3, growth_rate), jnp.float32),
        # 1x1 conv as [in=3G, out=3G]
        "wo": scale1 * jax.random.normal(
            k3, (3 * growth_rate, 3 * growth_rate), jnp.float32),
        "bo": scale1 * jax.random.normal(k4, (1, 3 * growth_rate), jnp.float32),
    }


def init_dense_block(key, in_size, growth_rate, num_layers):
    keys = jax.random.split(key, num_layers)
    return [
        init_dense_layer(keys[i], in_size + 3 * i * growth_rate, growth_rate)
        for i in range(num_layers)
    ]


# ---------------- pure-JAX reference (for verification) ----------------------

def dense_layer_ref(x_nhwc, params):
    feats = []
    for di, d in enumerate(DILATIONS):
        y = jax.lax.conv_general_dilated(
            x_nhwc, params["wd"][di],
            window_strides=(1, 1),
            padding=((d, d), (d, d)),
            rhs_dilation=(d, d),
            dimension_numbers=("NHWC", "HWIO", "NHWC"))
        feats.append(y + params["bd"][di])
    cat = jnp.concatenate(feats, axis=-1)
    return jnp.einsum("bhwc,co->bhwo", cat, params["wo"]) + params["bo"][0]


def dense_block_ref(x_nchw, block_params):
    x = jnp.transpose(x_nchw, (0, 2, 3, 1))
    for params in block_params:
        out = dense_layer_ref(x, params)
        x = jnp.concatenate([x, out], axis=-1)
    return jnp.transpose(x, (0, 3, 1, 2))


# -----------------------------------------------------------------------------

if __name__ == "__main__":
    B, C, Hs, Ws = 2, 4, 16, 16      # input NCHW: [2, 4, 16, 16]
    growth_rate = 4
    num_layers = 2

    root = jax.random.PRNGKey(0)
    kx, kp = jax.random.split(root)
    x = jax.random.normal(kx, (B, C, Hs, Ws), jnp.float32)
    block_params = init_dense_block(kp, C, growth_rate, num_layers)

    y = dense_block_apply(x, block_params)
    y = jax.block_until_ready(y)

    expected_channels = C + 3 * growth_rate * num_layers
    assert y.shape == (B, expected_channels, Hs, Ws), y.shape

    y_ref = dense_block_ref(x, block_params)
    max_err = float(jnp.max(jnp.abs(y - y_ref)))
    # bf16 operands with f32 accumulation -> relaxed tolerance vs f32 reference.
    assert jnp.allclose(y, y_ref, rtol=5e-2, atol=5e-2), max_err

    print("KERNEL_OK")
</pallas_src>

<mosaic_0001>
module attributes {stable_mosaic.version = 11 : i64} {
  func.func @dense_block_kernel(%arg0: i32, %arg1: memref<1x26x64xbf16, #tpu.memory_space<vmem>>, %arg2: memref<7x64x192xbf16, #tpu.memory_space<vmem>>, %arg3: memref<7x256x192xbf16, #tpu.memory_space<vmem>>, %arg4: memref<1x192xf32, #tpu.memory_space<vmem>>, %arg5: memref<1x192xf32, #tpu.memory_space<vmem>>, %arg6: memref<1x16x384xf32, #tpu.memory_space<vmem>>, %arg7: memref<26x256xbf16, #tpu.memory_space<vmem>>) attributes {dimension_semantics = [#tpu.dimension_semantics<parallel>], iteration_bounds = array<i64: 2>, scalar_prefetch = 0 : i64, scratch_operands = 1 : i64, tpu.core_type = #tpu.core_type<tc>, window_params = [{transform_indices = @transform_0, window_bounds = array<i64: 1, 26, 64>}, {pipeline_mode = #tpu.pipeline_mode<synchronous>, transform_indices = @transform_1, window_bounds = array<i64: 7, 64, 192>}, {pipeline_mode = #tpu.pipeline_mode<synchronous>, transform_indices = @transform_2, window_bounds = array<i64: 7, 256, 192>}, {pipeline_mode = #tpu.pipeline_mode<synchronous>, transform_indices = @transform_3, window_bounds = array<i64: 1, 192>}, {pipeline_mode = #tpu.pipeline_mode<synchronous>, transform_indices = @transform_4, window_bounds = array<i64: 1, 192>}, {transform_indices = @transform_5, window_bounds = array<i64: 1, 16, 384>}]} {
    %cst = arith.constant 0.000000e+00 : bf16
    %0 = vector.broadcast %cst : bf16 to vector<26x256xbf16>
    %c0 = arith.constant 0 : index
    %c0_0 = arith.constant 0 : index
    %1 = vector.load %arg7[%c0, %c0_0] : memref<26x256xbf16, #tpu.memory_space<vmem>>, vector<26x256xbf16>
    tpu.vector_store %arg7[%c0, %c0_0], %0 {strides = array<i32>} : memref<26x256xbf16, #tpu.memory_space<vmem>>, vector<26x256xbf16>,
    %c0_1 = arith.constant 0 : index
    %c0_2 = arith.constant 0 : index
    %c0_3 = arith.constant 0 : index
    %2 = vector.load %arg1[%c0_1, %c0_2, %c0_3] : memref<1x26x64xbf16, #tpu.memory_space<vmem>>, vector<1x26x64xbf16>
    %3 = vector.shape_cast %2 : vector<1x26x64xbf16> to vector<26x64xbf16>
    %c0_4 = arith.constant 0 : index
    %c0_5 = arith.constant 0 : index
    %4 = vector.load %arg7[%c0_4, %c0_5] : memref<26x256xbf16, #tpu.memory_space<vmem>>, vector<26x64xbf16>
    tpu.vector_store %arg7[%c0_4, %c0_5], %3 {strides = array<i32>} : memref<26x256xbf16, #tpu.memory_space<vmem>>, vector<26x64xbf16>,
    %c0_6 = arith.constant 0 : index
    %c0_7 = arith.constant 0 : index
    %5 = vector.load %arg4[%c0_6, %c0_7] : memref<1x192xf32, #tpu.memory_space<vmem>>, vector<1x192xf32>
    %6 = vector.shape_cast %5 : vector<1x192xf32> to vector<1x192xf32>
    %7 = vector.broadcast %6 : vector<1x192xf32> to vector<16x192xf32>
    %c0_8 = arith.constant 0 : index
    %c0_9 = arith.constant 0 : index
    %8 = vector.load %arg7[%c0_8, %c0_9] : memref<26x256xbf16, #tpu.memory_space<vmem>>, vector<16x64xbf16>
    %c0_10 = arith.constant 0 : index
    %c0_11 = arith.constant 0 : index
    %c0_12 = arith.constant 0 : index
    %9 = vector.load %arg2[%c0_10, %c0_11, %c0_12] : memref<7x64x192xbf16, #tpu.memory_space<vmem>>, vector<1x64x192xbf16>
    %10 = vector.shape_cast %9 : vector<1x64x192xbf16> to vector<64x192xbf16>
    %cst_13 = arith.constant dense<0.000000e+00> : vector<16x192xf32>
    %11 = tpu.matmul %8, %10, %cst_13 {dimension_numbers = #tpu.dot_dimension_numbers<[1], [0], [0], [1], [0, 0, 1, 1], [], []>} : vector<16x64xbf16>, vector<64x192xbf16>, vector<16x192xf32> -> vector<16x192xf32>
    %12 = arith.addf %7, %11 : vector<16x192xf32>
    %c2 = arith.constant 2 : index
    %c0_14 = arith.constant 0 : index
    %13 = vector.load %arg7[%c2, %c0_14] : memref<26x256xbf16, #tpu.memory_space<vmem>>, vector<16x64xbf16>
    %c1 = arith.constant 1 : index
    %c0_15 = arith.constant 0 : index
    %c0_16 = arith.constant 0 : index
    %14 = vector.load %arg2[%c1, %c0_15, %c0_16] : memref<7x64x192xbf16, #tpu.memory_space<vmem>>, vector<1x64x192xbf16>
    %15 = vector.shape_cast %14 : vector<1x64x192xbf16> to vector<64x192xbf16>
    %cst_17 = arith.constant dense<0.000000e+00> : vector<16x192xf32>
    %16 = tpu.matmul %13, %15, %cst_17 {dimension_numbers = #tpu.dot_dimension_numbers<[1], [0], [0], [1], [0, 0, 1, 1], [], []>} : vector<16x64xbf16>, vector<64x192xbf16>, vector<16x192xf32> -> vector<16x192xf32>
    %17 = arith.addf %12, %16 : vector<16x192xf32>
    %c4 = arith.constant 4 : index
    %c0_18 = arith.constant 0 : index
    %18 = vector.load %arg7[%c4, %c0_18] : memref<26x256xbf16, #tpu.memory_space<vmem>>, vector<16x64xbf16>
    %c2_19 = arith.constant 2 : index
    %c0_20 = arith.constant 0 : index
    %c0_21 = arith.constant 0 : index
    %19 = vector.load %arg2[%c2_19, %c0_20, %c0_21] : memref<7x64x192xbf16, #tpu.memory_space<vmem>>, vector<1x64x192xbf16>
    %20 = vector.shape_cast %19 : vector<1x64x192xbf16> to vector<64x192xbf16>
    %cst_22 = arith.constant dense<0.000000e+00> : vector<16x192xf32>
    %21 = tpu.matmul %18, %20, %cst_22 {dimension_numbers = #tpu.dot_dimension_numbers<[1], [0], [0], [1], [0, 0, 1, 1], [], []>} : vector<16x64xbf16>, vector<64x192xbf16>, vector<16x192xf32> -> vector<16x192xf32>
    %22 = arith.addf %17, %21 : vector<16x192xf32>
    %c5 = arith.constant 5 : index
    %c0_23 = arith.constant 0 : index
    %23 = vector.load %arg7[%c5, %c0_23] : memref<26x256xbf16, #tpu.memory_space<vmem>>, vector<16x64xbf16>
    %c3 = arith.constant 3 : index
    %c0_24 = arith.constant 0 : index
    %c0_25 = arith.constant 0 : index
    %24 = vector.load %arg2[%c3, %c0_24, %c0_25] : memref<7x64x192xbf16, #tpu.memory_space<vmem>>, vector<1x64x192xbf16>
    %25 = vector.shape_cast %24 : vector<1x64x192xbf16> to vector<64x192xbf16>
    %cst_26 = arith.constant dense<0.000000e+00> : vector<16x192xf32>
    %26 = tpu.matmul %23, %25, %cst_26 {dimension_numbers = #tpu.dot_dimension_numbers<[1], [0], [0], [1], [0, 0, 1, 1], [], []>} : vector<16x64xbf16>, vector<64x192xbf16>, vector<16x192xf32> -> vector<16x192xf32>
    %27 = arith.addf %22, %26 : vector<16x192xf32>
    %c6 = arith.constant 6 : index
    %c0_27 = arith.constant 0 : index
    %28 = vector.load %arg7[%c6, %c0_27] : memref<26x256xbf16, #tpu.memory_space<vmem>>, vector<16x64xbf16>
    %c4_28 = arith.constant 4 : index
    %c0_29 = arith.constant 0 : index
    %c0_30 = arith.constant 0 : index
    %29 = vector.load %arg2[%c4_28, %c0_29, %c0_30] : memref<7x64x192xbf16, #tpu.memory_space<vmem>>, vector<1x64x192xbf16>
    %30 = vector.shape_cast %29 : vector<1x64x192xbf16> to vector<64x192xbf16>
    %cst_31 = arith.constant dense<0.000000e+00> : vector<16x192xf32>
    %31 = tpu.matmul %28, %30, %cst_31 {dimension_numbers = #tpu.dot_dimension_numbers<[1], [0], [0], [1], [0, 0, 1, 1], [], []>} : vector<16x64xbf16>, vector<64x192xbf16>, vector<16x192xf32> -> vector<16x192xf32>
    %32 = arith.addf %27, %31 : vector<16x192xf32>
    %c8 = arith.constant 8 : index
    %c0_32 = arith.constant 0 : index
    %33 = vector.load %arg7[%c8, %c0_32] : memref<26x256xbf16, #tpu.memory_space<vmem>>, vector<16x64xbf16>
    %c5_33 = arith.constant 5 : index
    %c0_34 = arith.constant 0 : index
    %c0_35 = arith.constant 0 : index
    %34 = vector.load %arg2[%c5_33, %c0_34, %c0_35] : memref<7x64x192xbf16, #tpu.memory_space<vmem>>, vector<1x64x192xbf16>
    %35 = vector.shape_cast %34 : vector<1x64x192xbf16> to vector<64x192xbf16>
    %cst_36 = arith.constant dense<0.000000e+00> : vector<16x192xf32>
    %36 = tpu.matmul %33, %35, %cst_36 {dimension_numbers = #tpu.dot_dimension_numbers<[1], [0], [0], [1], [0, 0, 1, 1], [], []>} : vector<16x64xbf16>, vector<64x192xbf16>, vector<16x192xf32> -> vector<16x192xf32>
    %37 = arith.addf %32, %36 : vector<16x192xf32>
    %c10 = arith.constant 10 : index
    %c0_37 = arith.constant 0 : index
    %38 = vector.load %arg7[%c10, %c0_37] : memref<26x256xbf16, #tpu.memory_space<vmem>>, vector<16x64xbf16>
    %c6_38 = arith.constant 6 : index
    %c0_39 = arith.constant 0 : index
    %c0_40 = arith.constant 0 : index
    %39 = vector.load %arg2[%c6_38, %c0_39, %c0_40] : memref<7x64x192xbf16, #tpu.memory_space<vmem>>, vector<1x64x192xbf16>
    %40 = vector.shape_cast %39 : vector<1x64x192xbf16> to vector<64x192xbf16>
    %cst_41 = arith.constant dense<0.000000e+00> : vector<16x192xf32>
    %41 = tpu.matmul %38, %40, %cst_41 {dimension_numbers = #tpu.dot_dimension_numbers<[1], [0], [0], [1], [0, 0, 1, 1], [], []>} : vector<16x64xbf16>, vector<64x192xbf16>, vector<16x192xf32> -> vector<16x192xf32>
    %42 = arith.addf %37, %41 : vector<16x192xf32>
    %c0_42 = arith.constant 0 : index
    %c0_43 = arith.constant 0 : index
    %c0_44 = arith.constant 0 : index
    %43 = vector.load %arg6[%c0_42, %c0_43, %c0_44] : memref<1x16x384xf32, #tpu.memory_space<vmem>>, vector<1x16x192xf32>
    %44 = vector.shape_cast %43 : vector<1x16x192xf32> to vector<16x192xf32>
    %45 = vector.shape_cast %42 : vector<16x192xf32> to vector<1x16x192xf32>
    tpu.vector_store %arg6[%c0_42, %c0_43, %c0_44], %45 {strides = array<i32>} : memref<1x16x384xf32, #tpu.memory_space<vmem>>, vector<1x16x192xf32>,
    %46 = arith.truncf %42 : vector<16x192xf32> to vector<16x192xbf16>
    %c5_45 = arith.constant 5 : index
    %c64 = arith.constant 64 : index
    %47 = vector.load %arg7[%c5_45, %c64] : memref<26x256xbf16, #tpu.memory_space<vmem>>, vector<16x192xbf16>
    tpu.vector_store %arg7[%c5_45, %c64], %46 {strides = array<i32>} : memref<26x256xbf16, #tpu.memory_space<vmem>>, vector<16x192xbf16>,
    %c0_46 = arith.constant 0 : index
    %c0_47 = arith.constant 0 : index
    %48 = vector.load %arg5[%c0_46, %c0_47] : memref<1x192xf32, #tpu.memory_space<vmem>>, vector<1x192xf32>
    %49 = vector.shape_cast %48 : vector<1x192xf32> to vector<1x192xf32>
    %50 = vector.broadcast %49 : vector<1x192xf32> to vector<16x192xf32>
    %c0_48 = arith.constant 0 : index
    %c0_49 = arith.constant 0 : index
    %51 = vector.load %arg7[%c0_48, %c0_49] : memref<26x256xbf16, #tpu.memory_space<vmem>>, vector<16x256xbf16>
    %c0_50 = arith.constant 0 : index
    %c0_51 = arith.constant 0 : index
    %c0_52 = arith.constant 0 : index
    %52 = vector.load %arg3[%c0_50, %c0_51, %c0_52] : memref<7x256x192xbf16, #tpu.memory_space<vmem>>, vector<1x256x192xbf16>
    %53 = vector.shape_cast %52 : vector<1x256x192xbf16> to vector<256x192xbf16>
    %cst_53 = arith.constant dense<0.000000e+00> : vector<16x192xf32>
    %54 = tpu.matmul %51, %53, %cst_53 {dimension_numbers = #tpu.dot_dimension_numbers<[1], [0], [0], [1], [0, 0, 1, 1], [], []>} : vector<16x256xbf16>, vector<256x192xbf16>, vector<16x192xf32> -> vector<16x192xf32>
    %55 = arith.addf %50, %54 : vector<16x192xf32>
    %c2_54 = arith.constant 2 : index
    %c0_55 = arith.constant 0 : index
    %56 = vector.load %arg7[%c2_54, %c0_55] : memref<26x256xbf16, #tpu.memory_space<vmem>>, vector<16x256xbf16>
    %c1_56 = arith.constant 1 : index
    %c0_57 = arith.constant 0 : index
    %c0_58 = arith.constant 0 : index
    %57 = vector.load %arg3[%c1_56, %c0_57, %c0_58] : memref<7x256x192xbf16, #tpu.memory_space<vmem>>, vector<1x256x192xbf16>
    %58 = vector.shape_cast %57 : vector<1x256x192xbf16> to vector<256x192xbf16>
    %cst_59 = arith.constant dense<0.000000e+00> : vector<16x192xf32>
    %59 = tpu.matmul %56, %58, %cst_59 {dimension_numbers = #tpu.dot_dimension_numbers<[1], [0], [0], [1], [0, 0, 1, 1], [], []>} : vector<16x256xbf16>, vector<256x192xbf16>, vector<16x192xf32> -> vector<16x192xf32>
    %60 = arith.addf %55, %59 : vector<16x192xf32>
    %c4_60 = arith.constant 4 : index
    %c0_61 = arith.constant 0 : index
    %61 = vector.load %arg7[%c4_60, %c0_61] : memref<26x256xbf16, #tpu.memory_space<vmem>>, vector<16x256xbf16>
    %c2_62 = arith.constant 2 : index
    %c0_63 = arith.constant 0 : index
    %c0_64 = arith.constant 0 : index
    %62 = vector.load %arg3[%c2_62, %c0_63, %c0_64] : memref<7x256x192xbf16, #tpu.memory_space<vmem>>, vector<1x256x192xbf16>
    %63 = vector.shape_cast %62 : vector<1x256x192xbf16> to vector<256x192xbf16>
    %cst_65 = arith.constant dense<0.000000e+00> : vector<16x192xf32>
    %64 = tpu.matmul %61, %63, %cst_65 {dimension_numbers = #tpu.dot_dimension_numbers<[1], [0], [0], [1], [0, 0, 1, 1], [], []>} : vector<16x256xbf16>, vector<256x192xbf16>, vector<16x192xf32> -> vector<16x192xf32>
    %65 = arith.addf %60, %64 : vector<16x192xf32>
    %c5_66 = arith.constant 5 : index
    %c0_67 = arith.constant 0 : index
    %66 = vector.load %arg7[%c5_66, %c0_67] : memref<26x256xbf16, #tpu.memory_space<vmem>>, vector<16x256xbf16>
    %c3_68 = arith.constant 3 : index
    %c0_69 = arith.constant 0 : index
    %c0_70 = arith.constant 0 : index
    %67 = vector.load %arg3[%c3_68, %c0_69, %c0_70] : memref<7x256x192xbf16, #tpu.memory_space<vmem>>, vector<1x256x192xbf16>
    %68 = vector.shape_cast %67 : vector<1x256x192xbf16> to vector<256x192xbf16>
    %cst_71 = arith.constant dense<0.000000e+00> : vector<16x192xf32>
    %69 = tpu.matmul %66, %68, %cst_71 {dimension_numbers = #tpu.dot_dimension_numbers<[1], [0], [0], [1], [0, 0, 1, 1], [], []>} : vector<16x256xbf16>, vector<256x192xbf16>, vector<16x192xf32> -> vector<16x192xf32>
    %70 = arith.addf %65, %69 : vector<16x192xf32>
    %c6_72 = arith.constant 6 : index
    %c0_73 = arith.constant 0 : index
    %71 = vector.load %arg7[%c6_72, %c0_73] : memref<26x256xbf16, #tpu.memory_space<vmem>>, vector<16x256xbf16>
    %c4_74 = arith.constant 4 : index
    %c0_75 = arith.constant 0 : index
    %c0_76 = arith.constant 0 : index
    %72 = vector.load %arg3[%c4_74, %c0_75, %c0_76] : memref<7x256x192xbf16, #tpu.memory_space<vmem>>, vector<1x256x192xbf16>
    %73 = vector.shape_cast %72 : vector<1x256x192xbf16> to vector<256x192xbf16>
    %cst_77 = arith.constant dense<0.000000e+00> : vector<16x192xf32>
    %74 = tpu.matmul %71, %73, %cst_77 {dimension_numbers = #tpu.dot_dimension_numbers<[1], [0], [0], [1], [0, 0, 1, 1], [], []>} : vector<16x256xbf16>, vector<256x192xbf16>, vector<16x192xf32> -> vector<16x192xf32>
    %75 = arith.addf %70, %74 : vector<16x192xf32>
    %c8_78 = arith.constant 8 : index
    %c0_79 = arith.constant 0 : index
    %76 = vector.load %arg7[%c8_78, %c0_79] : memref<26x256xbf16, #tpu.memory_space<vmem>>, vector<16x256xbf16>
    %c5_80 = arith.constant 5 : index
    %c0_81 = arith.constant 0 : index
    %c0_82 = arith.constant 0 : index
    %77 = vector.load %arg3[%c5_80, %c0_81, %c0_82] : memref<7x256x192xbf16, #tpu.memory_space<vmem>>, vector<1x256x192xbf16>
    %78 = vector.shape_cast %77 : vector<1x256x192xbf16> to vector<256x192xbf16>
    %cst_83 = arith.constant dense<0.000000e+00> : vector<16x192xf32>
    %79 = tpu.matmul %76, %78, %cst_83 {dimension_numbers = #tpu.dot_dimension_numbers<[1], [0], [0], [1], [0, 0, 1, 1], [], []>} : vector<16x256xbf16>, vector<256x192xbf16>, vector<16x192xf32> -> vector<16x192xf32>
    %80 = arith.addf %75, %79 : vector<16x192xf32>
    %c10_84 = arith.constant 10 : index
    %c0_85 = arith.constant 0 : index
    %81 = vector.load %arg7[%c10_84, %c0_85] : memref<26x256xbf16, #tpu.memory_space<vmem>>, vector<16x256xbf16>
    %c6_86 = arith.constant 6 : index
    %c0_87 = arith.constant 0 : index
    %c0_88 = arith.constant 0 : index
    %82 = vector.load %arg3[%c6_86, %c0_87, %c0_88] : memref<7x256x192xbf16, #tpu.memory_space<vmem>>, vector<1x256x192xbf16>
    %83 = vector.shape_cast %82 : vector<1x256x192xbf16> to vector<256x192xbf16>
    %cst_89 = arith.constant dense<0.000000e+00> : vector<16x192xf32>
    %84 = tpu.matmul %81, %83, %cst_89 {dimension_numbers = #tpu.dot_dimension_numbers<[1], [0], [0], [1], [0, 0, 1, 1], [], []>} : vector<16x256xbf16>, vector<256x192xbf16>, vector<16x192xf32> -> vector<16x192xf32>
    %85 = arith.addf %80, %84 : vector<16x192xf32>
    %c0_90 = arith.constant 0 : index
    %c0_91 = arith.constant 0 : index
    %c192 = arith.constant 192 : index
    %86 = vector.load %arg6[%c0_90, %c0_91, %c192] : memref<1x16x384xf32, #tpu.memory_space<vmem>>, vector<1x16x192xf32>
    %87 = vector.shape_cast %86 : vector<1x16x192xf32> to vector<16x192xf32>
    %88 = vector.shape_cast %85 : vector<16x192xf32> to vector<1x16x192xf32>
    tpu.vector_store %arg6[%c0_90, %c0_91, %c192], %88 {strides = array<i32>} : memref<1x16x384xf32, #tpu.memory_space<vmem>>, vector<1x16x192xf32>,
    return
  }
  func.func @transform_0(%arg0: i32) -> (i32, i32, i32) {
    %c0_i32 = arith.constant 0 : i32
    %c0_i32_0 = arith.constant 0 : i32
    %c0_i32_1 = arith.constant 0 : i32
    return %arg0, %c0_i32, %c0_i32_0 : i32, i32, i32
  }
  func.func @transform_1(%arg0: i32) -> (i32, i32, i32) {
    %c0_i32 = arith.constant 0 : i32
    %c0_i32_0 = arith.constant 0 : i32
    %c0_i32_1 = arith.constant 0 : i32
    %c0_i32_2 = arith.constant 0 : i32
    return %c0_i32, %c0_i32_0, %c0_i32_1 : i32, i32, i32
  }
  func.func @transform_2(%arg0: i32) -> (i32, i32, i32) {
    %c0_i32 = arith.constant 0 : i32
    %c0_i32_0 = arith.constant 0 : i32
    %c0_i32_1 = arith.constant 0 : i32
    %c0_i32_2 = arith.constant 0 : i32
    return %c0_i32, %c0_i32_0, %c0_i32_1 : i32, i32, i32
  }
  func.func @transform_3(%arg0: i32) -> (i32, i32) {
    %c0_i32 = arith.constant 0 : i32
    %c0_i32_0 = arith.constant 0 : i32
    %c0_i32_1 = arith.constant 0 : i32
    return %c0_i32, %c0_i32_0 : i32, i32
  }
  func.func @transform_4(%arg0: i32) -> (i32, i32) {
    %c0_i32 = arith.constant 0 : i32
    %c0_i32_0 = arith.constant 0 : i32
    %c0_i32_1 = arith.constant 0 : i32
    return %c0_i32, %c0_i32_0 : i32, i32
  }
  func.func @transform_5(%arg0: i32) -> (i32, i32, i32) {
    %c0_i32 = arith.constant 0 : i32
    %c0_i32_0 = arith.constant 0 : i32
    %c0_i32_1 = arith.constant 0 : i32
    return %arg0, %c0_i32, %c0_i32_0 : i32, i32, i32
  }
}

</mosaic_0001>

<llo_original>
// kernel: tpu_custom_call.1
$region0: #{tpu_custom_call.1}
  #allocation0 [shape = 'u32[]', space=smem, size = 0x4, offset = 0x4, fixed_abs, tag = 'smem constant byte address 0x4 - core index']
  #allocation1 [shape = 'u32[144,128]{1,0:T(1,128)}', space=vmem, size = 0x12000, scoped, tag = 'internal scratch']
  #allocation2 [shape = 'bf16[26,256]{1,0:T(8,128)(2,1)}', space=vmem, size = 0x4000, scoped, tag = 'scratch operand']
  %s0 = inlined_call_operand.vmem [shape: bf16[2,26,64], index: 0, kind: input, shape index: {}]
  %s1 = inlined_call_operand.vmem [shape: bf16[7,64,192], index: 1, kind: input, shape index: {}]
  %s2 = inlined_call_operand.vmem [shape: bf16[7,256,192], index: 2, kind: input, shape index: {}]
  %s3 = inlined_call_operand.vmem [shape: f32[1,192], index: 3, kind: input, shape index: {}]
  %s4 = inlined_call_operand.vmem [shape: f32[1,192], index: 4, kind: input, shape index: {}]
  %s5 = inlined_call_operand.hbm [shape: f32[2,16,384], index: 5, kind: output, shape index: {}]
  %s6 = sld [smem:[#allocation0]]
  $region53: #{tpu_custom_call.1} parent=0
    _
  %s8 = ssub.s32 1, %s6
  %s9 = scalar_select 0, %s8, %s6
  $region1: #{tpu_custom_call.1} parent=0
    #allocation3 [shape = 'u8[49152]{0}', space=vmem, size = 0xc000, scoped, tag = 'output window, operand 0']
    #allocation4 [shape = 's32[2]{0}', space=sflag, size = 0x8, scoped, tag = 'scoped memory for tpu_custom_call.1']
    %10 = vsyncpa [#allocation4], 0
    %s11 = scalar_lea.sflag [#allocation4], 1
    %12 = vsyncpa %s11, 0
    loop: start=0, step=1, limit=4
    $region2: #{tpu_custom_call.1} parent=1 // loop_pre_header
      _
    $region3: #{tpu_custom_call.1} parent=1 // loop_header
      %s14 = sphi 0, %s18
      %p15 = scmp.ge.s32.totalorder %s14, 4
      %s24 = sphi 0, %s26
      %s27 = sphi 0, %s24
      %s28 = sphi 0, %s27
      %s44 = sphi 0, %s28
      %s48 = sphi 0, %s48
      %s50 = sphi 0, %s48
      %s51 = sphi 0, %s50
      %s65 = sphi 0, %s51
      %s69 = sphi 0, %s69
      %s71 = sphi 0, %s69
      %s72 = sphi 0, %s71
      %s86 = sphi 0, %s72
      %s90 = sphi 0, %s90
      %s92 = sphi 0, %s90
      %s93 = sphi 0, %s92
      %s107 = sphi 0, %s93
      %s111 = sphi 0, %s111
      %s113 = sphi 0, %s111
      %s114 = sphi 0, %s113
      %s128 = sphi 0, %s114
      %s134 = sphi 0, %s136
      %s137 = sphi 0, %s134
      %s138 = sphi 0, %s137
      %s154 = sphi 0, %s138
    $region4: #{tpu_custom_call.1} parent=1 // loop_header_branch
      %17 = sbr.rel (%p15) target = $region8
    $region5: #{tpu_custom_call.1} parent=1 // loop_body
      %s19 = ssub.s32 %s14, 1
      %s20 = ssub.s32 %s14, 2
      %s21 = sadd.s32 %s14, 1
      %s22 = ssub.s32 %s14, %s21
      %p23 = scmp.eq.s32.totalorder %s22, 0
      %s25 = sadd.s32 %s24, 1
      %s26 = scalar_select %p23, %s24, %s25
      %p29 = pneg %p23
      %p30 = scmp.eq.s32.totalorder %s14, 1
      %p31 = por %p29, %p30
      %p32 = scmp.ne.s32.totalorder %s24, %s27
      %p33 = scmp.eq.s32.totalorder %s14, 0
      %p34 = por %p32, %p33
      %p35 = scmp.ne.s32.totalorder %s24, %s27
      %p36 = scmp.eq.s32.totalorder %s19, 1
      %p37 = por %p35, %p36
      %p38 = scmp.ne.s32.totalorder %s27, %s28
      %p39 = scmp.eq.s32.totalorder %s19, 0
      %p40 = por %p38, %p39
      %p41 = scmp.ne.s32.totalorder %s27, %s28
      %p42 = scmp.eq.s32.totalorder %s20, 1
      %p43 = por %p41, %p42
      %p45 = scmp.ne.s32.totalorder %s28, %s44
      %p46 = scmp.eq.s32.totalorder %s20, 0
      %p47 = por %p45, %p46
      %s49 = sadd.s32 %s48, 1
      %p52 = scmp.eq.s32.totalorder %s14, 1
      %p53 = scmp.ne.s32.totalorder %s48, %s50
      %p54 = scmp.eq.s32.totalorder %s14, 0
      %p55 = por %p53, %p54
      %p56 = scmp.ne.s32.totalorder %s48, %s50
      %p57 = scmp.eq.s32.totalorder %s19, 1
      %p58 = por %p56, %p57
      %p59 = scmp.ne.s32.totalorder %s50, %s51
      %p60 = scmp.eq.s32.totalorder %s19, 0
      %p61 = por %p59, %p60
      %p62 = scmp.ne.s32.totalorder %s50, %s51
      %p63 = scmp.eq.s32.totalorder %s20, 1
      %p64 = por %p62, %p63
      %p66 = scmp.ne.s32.totalorder %s51, %s65
      %p67 = scmp.eq.s32.totalorder %s20, 0
      %p68 = por %p66, %p67
      %s70 = sadd.s32 %s69, 1
      %p73 = scmp.eq.s32.totalorder %s14, 1
      %p74 = scmp.ne.s32.totalorder %s69, %s71
      %p75 = scmp.eq.s32.totalorder %s14, 0
      %p76 = por %p74, %p75
      %p77 = scmp.ne.s32.totalorder %s69, %s71
      %p78 = scmp.eq.s32.totalorder %s19, 1
      %p79 = por %p77, %p78
      %p80 = scmp.ne.s32.totalorder %s71, %s72
      %p81 = scmp.eq.s32.totalorder %s19, 0
      %p82 = por %p80, %p81
      %p83 = scmp.ne.s32.totalorder %s71, %s72
      %p84 = scmp.eq.s32.totalorder %s20, 1
      %p85 = por %p83, %p84
      %p87 = scmp.ne.s32.totalorder %s72, %s86
      %p88 = scmp.eq.s32.totalorder %s20, 0
      %p89 = por %p87, %p88
      %s91 = sadd.s32 %s90, 1
      %p94 = scmp.eq.s32.totalorder %s14, 1
      %p95 = scmp.ne.s32.totalorder %s90, %s92
      %p96 = scmp.eq.s32.totalorder %s14, 0
      %p97 = por %p95, %p96
      %p98 = scmp.ne.s32.totalorder %s90, %s92
      %p99 = scmp.eq.s32.totalorder %s19, 1
      %p100 = por %p98, %p99
      %p101 = scmp.ne.s32.totalorder %s92, %s93
      %p102 = scmp.eq.s32.totalorder %s19, 0
      %p103 = por %p101, %p102
      %p104 = scmp.ne.s32.totalorder %s92, %s93
      %p105 = scmp.eq.s32.totalorder %s20, 1
      %p106 = por %p104, %p105
      %p108 = scmp.ne.s32.totalorder %s93, %s107
      %p109 = scmp.eq.s32.totalorder %s20, 0
      %p110 = por %p108, %p109
      %s112 = sadd.s32 %s111, 1
      %p115 = scmp.eq.s32.totalorder %s14, 1
      %p116 = scmp.ne.s32.totalorder %s111, %s113
      %p117 = scmp.eq.s32.totalorder %s14, 0
      %p118 = por %p116, %p117
      %p119 = scmp.ne.s32.totalorder %s111, %s113
      %p120 = scmp.eq.s32.totalorder %s19, 1
      %p121 = por %p119, %p120
      %p122 = scmp.ne.s32.totalorder %s113, %s114
      %p123 = scmp.eq.s32.totalorder %s19, 0
      %p124 = por %p122, %p123
      %p125 = scmp.ne.s32.totalorder %s113, %s114
      %p126 = scmp.eq.s32.totalorder %s20, 1
      %p127 = por %p125, %p126
      %p129 = scmp.ne.s32.totalorder %s114, %s128
      %p130 = scmp.eq.s32.totalorder %s20, 0
      %p131 = por %p129, %p130
      %s132 = ssub.s32 %s14, %s21
      %p133 = scmp.eq.s32.totalorder %s132, 0
      %s135 = sadd.s32 %s134, 1
      %s136 = scalar_select %p133, %s134, %s135
      %p139 = pneg %p133
      %p140 = scmp.eq.s32.totalorder %s14, 1
      %p141 = por %p139, %p140
      %p142 = scmp.ne.s32.totalorder %s134, %s137
      %p143 = scmp.eq.s32.totalorder %s14, 0
      %p144 = por %p142, %p143
      %p145 = scmp.ne.s32.totalorder %s134, %s137
      %p146 = scmp.eq.s32.totalorder %s19, 1
      %p147 = por %p145, %p146
      %p148 = scmp.ne.s32.totalorder %s137, %s138
      %p149 = scmp.eq.s32.totalorder %s19, 0
      %p150 = por %p148, %p149
      %p151 = scmp.ne.s32.totalorder %s137, %s138
      %p152 = scmp.eq.s32.totalorder %s20, 1
      %p153 = por %p151, %p152
      %p155 = scmp.ne.s32.totalorder %s138, %s154
      %p156 = scmp.eq.s32.totalorder %s20, 0
      %p157 = por %p155, %p156
      %p158 = scmp.le.s32.totalorder 1, %s14
      %p159 = scmp.lt.s32.totalorder %s14, 3
      %p160 = pnand %p158, %p159
      %p161 = pneg %p160
      // Predicated region
      $region9: #{tpu_custom_call.1} parent=5 // pred_check
        _
      $region10: #{tpu_custom_call.1} parent=5 // pred_check_branch
        %163 = sbr.rel (%p160) target = $region12
      $region11: #{tpu_custom_call.1} parent=5 // pred_region
        %s164 = ssub.s32 %s14, 1
        // Predicated region
        $region13: #{tpu_custom_call.1} parent=11 // pred_check
          %p165 = pneg %p61
        $region14: #{tpu_custom_call.1} parent=11 // pred_check_branch
          %167 = sbr.rel (%p165) target = $region16
        $region15: #{tpu_custom_call.1} parent=11 // pred_region
          _
        $region16: #{tpu_custom_call.1} parent=11 // pred_fallthru
          _
        // Predicated region
        $region17: #{tpu_custom_call.1} parent=11 // pred_check
          %p168 = pneg %p82
        $region18: #{tpu_custom_call.1} parent=11 // pred_check_branch
          %170 = sbr.rel (%p168) target = $region20
        $region19: #{tpu_custom_call.1} parent=11 // pred_region
          _
        $region20: #{tpu_custom_call.1} parent=11 // pred_fallthru
          _
        // Predicated region
        $region21: #{tpu_custom_call.1} parent=11 // pred_check
          %p171 = pneg %p103
        $region22: #{tpu_custom_call.1} parent=11 // pred_check_branch
          %173 = sbr.rel (%p171) target = $region24
        $region23: #{tpu_custom_call.1} parent=11 // pred_region
          _
        $region24: #{tpu_custom_call.1} parent=11 // pred_fallthru
          _
        // Predicated region
        $region25: #{tpu_custom_call.1} parent=11 // pred_check
          %p174 = pneg %p124
        $region26: #{tpu_custom_call.1} parent=11 // pred_check_branch
          %176 = sbr.rel (%p174) target = $region28
        $region27: #{tpu_custom_call.1} parent=11 // pred_region
          _
        $region28: #{tpu_custom_call.1} parent=11 // pred_fallthru
          _
      $region12: #{tpu_custom_call.1} parent=5 // pred_fallthru
        _
      %p177 = scmp.lt.s32.totalorder %s14, 2
      // Predicated region
      $region29: #{tpu_custom_call.1} parent=5 // pred_check
        %p178 = pneg %p177
      $region30: #{tpu_custom_call.1} parent=5 // pred_check_branch
        %180 = sbr.rel (%p178) target = $region32
      $region31: #{tpu_custom_call.1} parent=5 // pred_region
        // Predicated region
        $region33: #{tpu_custom_call.1} parent=31 // pred_check
          %p181 = pneg %p34
        $region34: #{tpu_custom_call.1} parent=31 // pred_check_branch
          %183 = sbr.rel (%p181) target = $region36
        $region35: #{tpu_custom_call.1} parent=31 // pred_region
          %p184 = scmp.lt.s32.totalorder %s14, 1
          %s185 = scalar_select %p184, %s14, 1
          %s186 = smul.addr %s185, 4
          %s187 = smul.addr %s186, 4
          %s188 = scalar_lea.vmem %s0, %s187
        $region36: #{tpu_custom_call.1} parent=31 // pred_fallthru
          _
      $region32: #{tpu_custom_call.1} parent=5 // pred_fallthru
        _
      %p189 = scmp.le.s32.totalorder 1, %s14
      %p190 = scmp.lt.s32.totalorder %s14, 3
      %p191 = pnand %p189, %p190
      %p192 = pneg %p191
      // Predicated region
      $region37: #{tpu_custom_call.1} parent=5 // pred_check
        _
      $region38: #{tpu_custom_call.1} parent=5 // pred_check_branch
        %194 = sbr.rel (%p191) target = $region40
      $region39: #{tpu_custom_call.1} parent=5 // pred_region
        %s195 = ssub.s32 %s14, 1
        %p196 = scmp.lt.s32.totalorder %s19, 1
        %s197 = scalar_select %p196, %s19, 1
        %s198 = smul.addr %s197, 4
        %s199 = smul.addr %s198, 4
        %s200 = scalar_lea.vmem %s0, %s199
        %p201 = pneg %p40
        %p202 = pneg %p37
        %p203 = pneg %p61
        %p204 = pneg %p58
        %p205 = pneg %p82
        %p206 = pneg %p79
        %p207 = pneg %p103
        %p208 = pneg %p100
        %p209 = pneg %p124
        %p210 = pneg %p121
        %p211 = pneg %p150
        %p212 = pneg %p147
        %s213 = sand.u32 %s137, 1
        %s214 = scalar_lea.sflag [#allocation4], %s213
        %s215 = sand.u32 %s137, 1
        %s216 = smul.addr %s215, 48
        %s217 = scalar_lea.vmem [#allocation3], %s216
        %p218 = scmp.lt.s32.totalorder %s19, 1
        %s219 = scalar_select %p218, %s19, 1
        %s220 = smul.addr %s219, 4
        %s221 = smul.addr %s220, 4
        %s222 = scalar_lea.vmem %s0, %s221
        %224 = vst [vmem:[#allocation2] sm:$0xff] 0
        %225 = vst [vmem:[#allocation2 + $0x8] sm:$0xff] 0
        %226 = vst [vmem:[#allocation2 + $0x10] sm:$0xff] 0
        %227 = vst [vmem:[#allocation2 + $0x18] sm:$0x11] 0
        %v228 = vld [vmem:[%s222] sm:$0xf]
        %v229 = vld [vmem:[%s222 + $0x4] sm:$0xf]
        %v230 = vld [vmem:[%s222 + $0x8] sm:$0xf]
        %v231 = vld [vmem:[%s222 + $0xc] sm:$0x1]
        %vm232 = vcmask 519168
        %233 = vst.msk [vmem:[#allocation2] sm:$0xf] %vm232, %v228
        %234 = vst.msk [vmem:[#allocation2 + $0x8] sm:$0xf] %vm232, %v229
        %235 = vst.msk [vmem:[#allocation2 + $0x10] sm:$0xf] %vm232, %v230
        %vm236 = vcmask 516096
        %237 = vst.msk [vmem:[#allocation2 + $0x18] sm:$0x1] %vm236, %v231
        %v238 = vld [vmem:[%s3] sm:$0x3]
        %v240 = vlaneseq
        %v241 = vshrl.u32 %v240, 7
        %v242 = vsub.s32 0, %v241
        %v243 = vrot.slane %v238, %v242
        %v244 = vlaneseq
        %v245 = vshrl.u32 %v244, 7
        %v246 = vsub.s32 1, %v245
        %v247 = vrot.slane %v238, %v246
        %v250 = vld [vmem:[#allocation2] sm:$0xf]
        %v251 = vld [vmem:[#allocation2 + $0x8] sm:$0xf]
        %v252 = vld [vmem:[%s1] sm:$0xff]
        %v253 = vld [vmem:[%s1 + $0x8] sm:$0xff]
        %v254 = vld [vmem:[%s1 + $0x10] sm:$0xff]
        %v255 = vld [vmem:[%s1 + $0x18] sm:$0xff]
        %v256 = vld [vmem:[%s1 + $0x20] sm:$0xff]
        %v257 = vld [vmem:[%s1 + $0x28] sm:$0xff]
        %v258 = vld [vmem:[%s1 + $0x30] sm:$0xff]
        %v259 = vld [vmem:[%s1 + $0x38] sm:$0xff]
        %v262 = vunpack.c.l.b16 %v250
        %v263 = vunpack.c.l.b16 %v251
        %v264 = vpack.c.b16 %v263, %v262
        %v273 = vunpack.c.l.b16 %v252
        %v274 = vunpack.c.h.b16 %v252
        %v275 = vunpack.c.l.b16 %v253
        %v276 = vunpack.c.h.b16 %v253
        %v277 = vunpack.c.l.b16 %v254
        %v278 = vunpack.c.h.b16 %v254
        %v279 = vunpack.c.l.b16 %v255
        %v280 = vunpack.c.h.b16 %v255
        %v281 = vunpack.c.l.b16 %v256
        %v282 = vunpack.c.h.b16 %v256
        %v283 = vunpack.c.l.b16 %v257
        %v284 = vunpack.c.h.b16 %v257
        %v285 = vunpack.c.l.b16 %v258
        %v286 = vunpack.c.h.b16 %v258
        %v287 = vunpack.c.l.b16 %v259
        %v288 = vunpack.c.h.b16 %v259
        %v289 = vpack.c.b16 %v275, %v273
        %v290 = vpack.c.b16 %v276, %v274
        %v291 = vpack.c.b16 %v279, %v277
        %v292 = vpack.c.b16 %v280, %v278
        %v293 = vpack.c.b16 %v283, %v281
        %v294 = vpack.c.b16 %v284, %v282
        %v295 = vpack.c.b16 %v287, %v285
        %v296 = vpack.c.b16 %v288, %v286
        %vm305 = vcmask 523264
        %v307 = vsel %vm305, %v264, 0
        %309 = vmatprep.subr.bf16.mxu0 %v290
        %310 = vmatpush1.bf16.msra.mxu0 %v289
        %311 = vmatprep.subr.bf16.mxu0 %v292
        %312 = vmatpush1.bf16.msra.mxu0 %v291
        %313 = vmatprep.subr.bf16.mxu0 %v294
        %314 = vmatpush1.bf16.msra.mxu0 %v293
        %315 = vmatprep.subr.bf16.mxu0 %v296
        %316 = vmatpush1.bf16.msra.mxu0 %v295
        %317 = vmatprep.subr.bf16.mxu0 0
        %318 = vmatpush1.bf16.msra.mxu0 0
        %319 = vmatprep.subr.bf16.mxu0 0
        %320 = vmatpush1.bf16.msra.mxu0 0
        %321 = vmatprep.subr.bf16.mxu0 0
        %322 = vmatpush1.bf16.msra.mxu0 0
        %323 = vmatprep.subr.bf16.mxu0 0
        %324 = vmatpush1.bf16.msra.mxu0 0
        %325 = vmatprep.subr.bf16.mxu0 0
        %326 = vmatpush1.bf16.msra.mxu0 0
        %327 = vmatprep.subr.bf16.mxu0 0
        %328 = vmatpush1.bf16.msra.mxu0 0
        %329 = vmatprep.subr.bf16.mxu0 0
        %330 = vmatpush1.bf16.msra.mxu0 0
        %331 = vmatprep.subr.bf16.mxu0 0
        %332 = vmatpush1.bf16.msra.mxu0 0
        %333 = vmatprep.subr.bf16.mxu0 0
        %334 = vmatpush1.bf16.msra.mxu0 0
        %335 = vmatprep.subr.bf16.mxu0 0
        %336 = vmatpush1.bf16.msra.mxu0 0
        %337 = vmatprep.subr.bf16.mxu0 0
        %338 = vmatpush1.bf16.msra.mxu0 0
        %339 = vmatprep.subr.bf16.mxu0 0
        %340 = vmatpush1.bf16.msra.mxu0 0
        %341 = vmatprep.mubr.bf16.mxu0 0
        %342 = vmatmul.mubr.bf16.gmra.mrb[0].mxu0 %v307
        %v343 = vpop.f32.mrb[0].mxu0
        %v344 = vadd.f32 0.0, %v343
        %v345 = vpop.f32.mrb[0].mxu0
        %v346 = vadd.f32 0.0, %v345
        %v347 = vpop.f32.mrb[0].mxu0
        %v348 = vadd.f32 0.0, %v347
        %v349 = vpop.f32.mrb[0].mxu0
        %v350 = vadd.f32 0.0, %v349
        %351 = vdwg.mxu0
        %v352 = vadd.f32 %v243, %v344
        %v353 = vadd.f32 %v247, %v346
        %v354 = vadd.f32 %v243, %v348
        %v355 = vadd.f32 %v247, %v350
        %v356 = vld [vmem:[#allocation2] sm:$0xe]
        %v357 = vld [vmem:[#allocation2 + $0x8] sm:$0xf]
        %v358 = vld [vmem:[#allocation2 + $0x10] sm:$0x1]
        %s359 = scalar_lea.vmem %s1, 64
        %v360 = vld [vmem:[%s359] sm:$0xff]
        %v361 = vld [vmem:[%s359 + $0x8] sm:$0xff]
        %v362 = vld [vmem:[%s359 + $0x10] sm:$0xff]
        %v363 = vld [vmem:[%s359 + $0x18] sm:$0xff]
        %v364 = vld [vmem:[%s359 + $0x20] sm:$0xff]
        %v365 = vld [vmem:[%s359 + $0x28] sm:$0xff]
        %v366 = vld [vmem:[%s359 + $0x30] sm:$0xff]
        %v367 = vld [vmem:[%s359 + $0x38] sm:$0xff]
        %v371 = vunpack.c.l.b16 %v356
        %v372 = vunpack.c.l.b16 %v357
        %v373 = vunpack.c.l.b16 %v358
        %v374 = vpack.c.b16 %v372, %v371
        %v375 = vpack.c.b16 %v373, %v373
        %vm376 = vcmask 1046528
        %v377 = vrot.slane %v374, 1
        %v378 = vrot.slane %v375, 1
        %v379 = vsel %vm376, %v377, %v378
        %v388 = vunpack.c.l.b16 %v360
        %v389 = vunpack.c.h.b16 %v360
        %v390 = vunpack.c.l.b16 %v361
        %v391 = vunpack.c.h.b16 %v361
        %v392 = vunpack.c.l.b16 %v362
        %v393 = vunpack.c.h.b16 %v362
        %v394 = vunpack.c.l.b16 %v363
        %v395 = vunpack.c.h.b16 %v363
        %v396 = vunpack.c.l.b16 %v364
        %v397 = vunpack.c.h.b16 %v364
        %v398 = vunpack.c.l.b16 %v365
        %v399 = vunpack.c.h.b16 %v365
        %v400 = vunpack.c.l.b16 %v366
        %v401 = vunpack.c.h.b16 %v366
        %v402 = vunpack.c.l.b16 %v367
        %v403 = vunpack.c.h.b16 %v367
        %v404 = vpack.c.b16 %v390, %v388
        %v405 = vpack.c.b16 %v391, %v389
        %v406 = vpack.c.b16 %v394, %v392
        %v407 = vpack.c.b16 %v395, %v393
        %v408 = vpack.c.b16 %v398, %v396
        %v409 = vpack.c.b16 %v399, %v397
        %v410 = vpack.c.b16 %v402, %v400
        %v411 = vpack.c.b16 %v403, %v401
        %v421 = vsel %vm305, %v379, 0
        %423 = vmatprep.subr.bf16.mxu0 %v405
        %424 = vmatpush1.bf16.msra.mxu0 %v404
        %425 = vmatprep.subr.bf16.mxu0 %v407
        %426 = vmatpush1.bf16.msra.mxu0 %v406
        %427 = vmatprep.subr.bf16.mxu0 %v409
        %428 = vmatpush1.bf16.msra.mxu0 %v408
        %429 = vmatprep.subr.bf16.mxu0 %v411
        %430 = vmatpush1.bf16.msra.mxu0 %v410
        %431 = vmatprep.subr.bf16.mxu0 0
        %432 = vmatpush1.bf16.msra.mxu0 0
        %433 = vmatprep.subr.bf16.mxu0 0
        %434 = vmatpush1.bf16.msra.mxu0 0
        %435 = vmatprep.subr.bf16.mxu0 0
        %436 = vmatpush1.bf16.msra.mxu0 0
        %437 = vmatprep.subr.bf16.mxu0 0
        %438 = vmatpush1.bf16.msra.mxu0 0
        %439 = vmatprep.subr.bf16.mxu0 0
        %440 = vmatpush1.bf16.msra.mxu0 0
        %441 = vmatprep.subr.bf16.mxu0 0
        %442 = vmatpush1.bf16.msra.mxu0 0
        %443 = vmatprep.subr.bf16.mxu0 0
        %444 = vmatpush1.bf16.msra.mxu0 0
        %445 = vmatprep.subr.bf16.mxu0 0
        %446 = vmatpush1.bf16.msra.mxu0 0
        %447 = vmatprep.subr.bf16.mxu0 0
        %448 = vmatpush1.bf16.msra.mxu0 0
        %449 = vmatprep.subr.bf16.mxu0 0
        %450 = vmatpush1.bf16.msra.mxu0 0
        %451 = vmatprep.subr.bf16.mxu0 0
        %452 = vmatpush1.bf16.msra.mxu0 0
        %453 = vmatprep.subr.bf16.mxu0 0
        %454 = vmatpush1.bf16.msra.mxu0 0
        %455 = vmatprep.mubr.bf16.mxu0 0
        %456 = vmatmul.mubr.bf16.gmra.mrb[0].mxu0 %v421
        %v457 = vpop.f32.mrb[0].mxu0
        %v458 = vadd.f32 0.0, %v457
        %v459 = vpop.f32.mrb[0].mxu0
        %v460 = vadd.f32 0.0, %v459
        %v461 = vpop.f32.mrb[0].mxu0
        %v462 = vadd.f32 0.0, %v461
        %v463 = vpop.f32.mrb[0].mxu0
        %v464 = vadd.f32 0.0, %v463
        %465 = vdwg.mxu0
        %v466 = vadd.f32 %v352, %v458
        %v467 = vadd.f32 %v353, %v460
        %v468 = vadd.f32 %v354, %v462
        %v469 = vadd.f32 %v355, %v464
        %v470 = vld [vmem:[#allocation2] sm:$0xc]
        %v471 = vld [vmem:[#allocation2 + $0x10] sm:$0x3]
        %s472 = scalar_lea.vmem %s1, 128
        %v473 = vld [vmem:[%s472] sm:$0xff]
        %v474 = vld [vmem:[%s472 + $0x8] sm:$0xff]
        %v475 = vld [vmem:[%s472 + $0x10] sm:$0xff]
        %v476 = vld [vmem:[%s472 + $0x18] sm:$0xff]
        %v477 = vld [vmem:[%s472 + $0x20] sm:$0xff]
        %v478 = vld [vmem:[%s472 + $0x28] sm:$0xff]
        %v479 = vld [vmem:[%s472 + $0x30] sm:$0xff]
        %v480 = vld [vmem:[%s472 + $0x38] sm:$0xff]
        %v483 = vunpack.c.l.b16 %v470
        %v484 = vunpack.c.l.b16 %v471
        %v485 = vpack.c.b16 %v372, %v483
        %v486 = vpack.c.b16 %v484, %v484
        %vm487 = vcmask 1045504
        %v488 = vrot.slane %v485, 2
        %v489 = vrot.slane %v486, 2
        %v490 = vsel %vm487, %v488, %v489
        %v499 = vunpack.c.l.b16 %v473
        %v500 = vunpack.c.h.b16 %v473
        %v501 = vunpack.c.l.b16 %v474
        %v502 = vunpack.c.h.b16 %v474
        %v503 = vunpack.c.l.b16 %v475
        %v504 = vunpack.c.h.b16 %v475
        %v505 = vunpack.c.l.b16 %v476
        %v506 = vunpack.c.h.b16 %v476
        %v507 = vunpack.c.l.b16 %v477
        %v508 = vunpack.c.h.b16 %v477
        %v509 = vunpack.c.l.b16 %v478
        %v510 = vunpack.c.h.b16 %v478
        %v511 = vunpack.c.l.b16 %v479
        %v512 = vunpack.c.h.b16 %v479
        %v513 = vunpack.c.l.b16 %v480
        %v514 = vunpack.c.h.b16 %v480
        %v515 = vpack.c.b16 %v501, %v499
        %v516 = vpack.c.b16 %v502, %v500
        %v517 = vpack.c.b16 %v505, %v503
        %v518 = vpack.c.b16 %v506, %v504
        %v519 = vpack.c.b16 %v509, %v507
        %v520 = vpack.c.b16 %v510, %v508
        %v521 = vpack.c.b16 %v513, %v511
        %v522 = vpack.c.b16 %v514, %v512
        %v532 = vsel %vm305, %v490, 0
        %534 = vmatprep.subr.bf16.mxu0 %v516
        %535 = vmatpush1.bf16.msra.mxu0 %v515
        %536 = vmatprep.subr.bf16.mxu0 %v518
        %537 = vmatpush1.bf16.msra.mxu0 %v517
        %538 = vmatprep.subr.bf16.mxu0 %v520
        %539 = vmatpush1.bf16.msra.mxu0 %v519
        %540 = vmatprep.subr.bf16.mxu0 %v522
        %541 = vmatpush1.bf16.msra.mxu0 %v521
        %542 = vmatprep.subr.bf16.mxu0 0
        %543 = vmatpush1.bf16.msra.mxu0 0
        %544 = vmatprep.subr.bf16.mxu0 0
        %545 = vmatpush1.bf16.msra.mxu0 0
        %546 = vmatprep.subr.bf16.mxu0 0
        %547 = vmatpush1.bf16.msra.mxu0 0
        %548 = vmatprep.subr.bf16.mxu0 0
        %549 = vmatpush1.bf16.msra.mxu0 0
        %550 = vmatprep.subr.bf16.mxu0 0
        %551 = vmatpush1.bf16.msra.mxu0 0
        %552 = vmatprep.subr.bf16.mxu0 0
        %553 = vmatpush1.bf16.msra.mxu0 0
        %554 = vmatprep.subr.bf16.mxu0 0
        %555 = vmatpush1.bf16.msra.mxu0 0
        %556 = vmatprep.subr.bf16.mxu0 0
        %557 = vmatpush1.bf16.msra.mxu0 0
        %558 = vmatprep.subr.bf16.mxu0 0
        %559 = vmatpush1.bf16.msra.mxu0 0
        %560 = vmatprep.subr.bf16.mxu0 0
        %561 = vmatpush1.bf16.msra.mxu0 0
        %562 = vmatprep.subr.bf16.mxu0 0
        %563 = vmatpush1.bf16.msra.mxu0 0
        %564 = vmatprep.subr.bf16.mxu0 0
        %565 = vmatpush1.bf16.msra.mxu0 0
        %566 = vmatprep.mubr.bf16.mxu0 0
        %567 = vmatmul.mubr.bf16.gmra.mrb[0].mxu0 %v532
        %v568 = vpop.f32.mrb[0].mxu0
        %v569 = vadd.f32 0.0, %v568
        %v570 = vpop.f32.mrb[0].mxu0
        %v571 = vadd.f32 0.0, %v570
        %v572 = vpop.f32.mrb[0].mxu0
        %v573 = vadd.f32 0.0, %v572
        %v574 = vpop.f32.mrb[0].mxu0
        %v575 = vadd.f32 0.0, %v574
        %576 = vdwg.mxu0
        %v577 = vadd.f32 %v466, %v569
        %v578 = vadd.f32 %v467, %v571
        %v579 = vadd.f32 %v468, %v573
        %v580 = vadd.f32 %v469, %v575
        %v581 = vld [vmem:[#allocation2 + $0x10] sm:$0x7]
        %s582 = scalar_lea.vmem %s1, 192
        %v583 = vld [vmem:[%s582] sm:$0xff]
        %v584 = vld [vmem:[%s582 + $0x8] sm:$0xff]
        %v585 = vld [vmem:[%s582 + $0x10] sm:$0xff]
        %v586 = vld [vmem:[%s582 + $0x18] sm:$0xff]
        %v587 = vld [vmem:[%s582 + $0x20] sm:$0xff]
        %v588 = vld [vmem:[%s582 + $0x28] sm:$0xff]
        %v589 = vld [vmem:[%s582 + $0x30] sm:$0xff]
        %v590 = vld [vmem:[%s582 + $0x38] sm:$0xff]
        %v592 = vunpack.c.l.b16 %v581
        %v593 = vpack.c.b16 %v592, %v592
        %vm594 = vsmask.f32 5376
        %v596 = vshrl.u32 %v485, 16
        %v598 = vrot.slane %v596, 2
        %v599 = vshll.u32 %v485, 16
        %v601 = vrot.slane %v599, 3
        %v602 = vor.u32 %v598, %v601
        %v604 = vshrl.u32 %v593, 16
        %v606 = vrot.slane %v604, 2
        %v607 = vshll.u32 %v593, 16
        %v609 = vrot.slane %v607, 3
        %v610 = vor.u32 %v606, %v609
        %v611 = vsel %vm594, %v602, %v610
        %v620 = vunpack.c.l.b16 %v583
        %v621 = vunpack.c.h.b16 %v583
        %v622 = vunpack.c.l.b16 %v584
        %v623 = vunpack.c.h.b16 %v584
        %v624 = vunpack.c.l.b16 %v585
        %v625 = vunpack.c.h.b16 %v585
        %v626 = vunpack.c.l.b16 %v586
        %v627 = vunpack.c.h.b16 %v586
        %v628 = vunpack.c.l.b16 %v587
        %v629 = vunpack.c.h.b16 %v587
        %v630 = vunpack.c.l.b16 %v588
        %v631 = vunpack.c.h.b16 %v588
        %v632 = vunpack.c.l.b16 %v589
        %v633 = vunpack.c.h.b16 %v589
        %v634 = vunpack.c.l.b16 %v590
        %v635 = vunpack.c.h.b16 %v590
        %v636 = vpack.c.b16 %v622, %v620
        %v637 = vpack.c.b16 %v623, %v621
        %v638 = vpack.c.b16 %v626, %v624
        %v639 = vpack.c.b16 %v627, %v625
        %v640 = vpack.c.b16 %v630, %v628
        %v641 = vpack.c.b16 %v631, %v629
        %v642 = vpack.c.b16 %v634, %v632
        %v643 = vpack.c.b16 %v635, %v633
        %v653 = vsel %vm305, %v611, 0
        %655 = vmatprep.subr.bf16.mxu0 %v637
        %656 = vmatpush1.bf16.msra.mxu0 %v636
        %657 = vmatprep.subr.bf16.mxu0 %v639
        %658 = vmatpush1.bf16.msra.mxu0 %v638
        %659 = vmatprep.subr.bf16.mxu0 %v641
        %660 = vmatpush1.bf16.msra.mxu0 %v640
        %661 = vmatprep.subr.bf16.mxu0 %v643
        %662 = vmatpush1.bf16.msra.mxu0 %v642
        %663 = vmatprep.subr.bf16.mxu0 0
        %664 = vmatpush1.bf16.msra.mxu0 0
        %665 = vmatprep.subr.bf16.mxu0 0
        %666 = vmatpush1.bf16.msra.mxu0 0
        %667 = vmatprep.subr.bf16.mxu0 0
        %668 = vmatpush1.bf16.msra.mxu0 0
        %669 = vmatprep.subr.bf16.mxu0 0
        %670 = vmatpush1.bf16.msra.mxu0 0
        %671 = vmatprep.subr.bf16.mxu0 0
        %672 = vmatpush1.bf16.msra.mxu0 0
        %673 = vmatprep.subr.bf16.mxu0 0
        %674 = vmatpush1.bf16.msra.mxu0 0
        %675 = vmatprep.subr.bf16.mxu0 0
        %676 = vmatpush1.bf16.msra.mxu0 0
        %677 = vmatprep.subr.bf16.mxu0 0
        %678 = vmatpush1.bf16.msra.mxu0 0
        %679 = vmatprep.subr.bf16.mxu0 0
        %680 = vmatpush1.bf16.msra.mxu0 0
        %681 = vmatprep.subr.bf16.mxu0 0
        %682 = vmatpush1.bf16.msra.mxu0 0
        %683 = vmatprep.subr.bf16.mxu0 0
        %684 = vmatpush1.bf16.msra.mxu0 0
        %685 = vmatprep.subr.bf16.mxu0 0
        %686 = vmatpush1.bf16.msra.mxu0 0
        %687 = vmatprep.mubr.bf16.mxu0 0
        %688 = vmatmul.mubr.bf16.gmra.mrb[0].mxu0 %v653
        %v689 = vpop.f32.mrb[0].mxu0
        %v690 = vadd.f32 0.0, %v689
        %v691 = vpop.f32.mrb[0].mxu0
        %v692 = vadd.f32 0.0, %v691
        %v693 = vpop.f32.mrb[0].mxu0
        %v694 = vadd.f32 0.0, %v693
        %v695 = vpop.f32.mrb[0].mxu0
        %v696 = vadd.f32 0.0, %v695
        %697 = vdwg.mxu0
        %v698 = vadd.f32 %v577, %v690
        %v699 = vadd.f32 %v578, %v692
        %v700 = vadd.f32 %v579, %v694
        %v701 = vadd.f32 %v580, %v696
        %v702 = vld [vmem:[#allocation2] sm:$0x8]
        %s703 = scalar_lea.vmem %s1, 256
        %v704 = vld [vmem:[%s703] sm:$0xff]
        %v705 = vld [vmem:[%s703 + $0x8] sm:$0xff]
        %v706 = vld [vmem:[%s703 + $0x10] sm:$0xff]
        %v707 = vld [vmem:[%s703 + $0x18] sm:$0xff]
        %v708 = vld [vmem:[%s703 + $0x20] sm:$0xff]
        %v709 = vld [vmem:[%s703 + $0x28] sm:$0xff]
        %v710 = vld [vmem:[%s703 + $0x30] sm:$0xff]
        %v711 = vld [vmem:[%s703 + $0x38] sm:$0xff]
        %v713 = vunpack.c.l.b16 %v702
        %v714 = vpack.c.b16 %v372, %v713
        %vm715 = vcmask 1044480
        %v716 = vrot.slane %v714, 3
        %v717 = vrot.slane %v593, 3
        %v718 = vsel %vm715, %v716, %v717
        %v727 = vunpack.c.l.b16 %v704
        %v728 = vunpack.c.h.b16 %v704
        %v729 = vunpack.c.l.b16 %v705
        %v730 = vunpack.c.h.b16 %v705
        %v731 = vunpack.c.l.b16 %v706
        %v732 = vunpack.c.h.b16 %v706
        %v733 = vunpack.c.l.b16 %v707
        %v734 = vunpack.c.h.b16 %v707
        %v735 = vunpack.c.l.b16 %v708
        %v736 = vunpack.c.h.b16 %v708
        %v737 = vunpack.c.l.b16 %v709
        %v738 = vunpack.c.h.b16 %v709
        %v739 = vunpack.c.l.b16 %v710
        %v740 = vunpack.c.h.b16 %v710
        %v741 = vunpack.c.l.b16 %v711
        %v742 = vunpack.c.h.b16 %v711
        %v743 = vpack.c.b16 %v729, %v727
        %v744 = vpack.c.b16 %v730, %v728
        %v745 = vpack.c.b16 %v733, %v731
        %v746 = vpack.c.b16 %v734, %v732
        %v747 = vpack.c.b16 %v737, %v735
        %v748 = vpack.c.b16 %v738, %v736
        %v749 = vpack.c.b16 %v741, %v739
        %v750 = vpack.c.b16 %v742, %v740
        %v760 = vsel %vm305, %v718, 0
        %762 = vmatprep.subr.bf16.mxu0 %v744
        %763 = vmatpush1.bf16.msra.mxu0 %v743
        %764 = vmatprep.subr.bf16.mxu0 %v746
        %765 = vmatpush1.bf16.msra.mxu0 %v745
        %766 = vmatprep.subr.bf16.mxu0 %v748
        %767 = vmatpush1.bf16.msra.mxu0 %v747
        %768 = vmatprep.subr.bf16.mxu0 %v750
        %769 = vmatpush1.bf16.msra.mxu0 %v749
        %770 = vmatprep.subr.bf16.mxu0 0
        %771 = vmatpush1.bf16.msra.mxu0 0
        %772 = vmatprep.subr.bf16.mxu0 0
        %773 = vmatpush1.bf16.msra.mxu0 0
        %774 = vmatprep.subr.bf16.mxu0 0
        %775 = vmatpush1.bf16.msra.mxu0 0
        %776 = vmatprep.subr.bf16.mxu0 0
        %777 = vmatpush1.bf16.msra.mxu0 0
        %778 = vmatprep.subr.bf16.mxu0 0
        %779 = vmatpush1.bf16.msra.mxu0 0
        %780 = vmatprep.subr.bf16.mxu0 0
        %781 = vmatpush1.bf16.msra.mxu0 0
        %782 = vmatprep.subr.bf16.mxu0 0
        %783 = vmatpush1.bf16.msra.mxu0 0
        %784 = vmatprep.subr.bf16.mxu0 0
        %785 = vmatpush1.bf16.msra.mxu0 0
        %786 = vmatprep.subr.bf16.mxu0 0
        %787 = vmatpush1.bf16.msra.mxu0 0
        %788 = vmatprep.subr.bf16.mxu0 0
        %789 = vmatpush1.bf16.msra.mxu0 0
        %790 = vmatprep.subr.bf16.mxu0 0
        %791 = vmatpush1.bf16.msra.mxu0 0
        %792 = vmatprep.subr.bf16.mxu0 0
        %793 = vmatpush1.bf16.msra.mxu0 0
        %794 = vmatprep.mubr.bf16.mxu0 0
        %795 = vmatmul.mubr.bf16.gmra.mrb[0].mxu0 %v760
        %v796 = vpop.f32.mrb[0].mxu0
        %v797 = vadd.f32 0.0, %v796
        %v798 = vpop.f32.mrb[0].mxu0
        %v799 = vadd.f32 0.0, %v798
        %v800 = vpop.f32.mrb[0].mxu0
        %v801 = vadd.f32 0.0, %v800
        %v802 = vpop.f32.mrb[0].mxu0
        %v803 = vadd.f32 0.0, %v802
        %804 = vdwg.mxu0
        %v805 = vadd.f32 %v698, %v797
        %v806 = vadd.f32 %v699, %v799
        %v807 = vadd.f32 %v700, %v801
        %v808 = vadd.f32 %v701, %v803
        %v809 = vld [vmem:[#allocation2 + $0x10] sm:$0xf]
        %s810 = scalar_lea.vmem %s1, 320
        %v811 = vld [vmem:[%s810] sm:$0xff]
        %v812 = vld [vmem:[%s810 + $0x8] sm:$0xff]
        %v813 = vld [vmem:[%s810 + $0x10] sm:$0xff]
        %v814 = vld [vmem:[%s810 + $0x18] sm:$0xff]
        %v815 = vld [vmem:[%s810 + $0x20] sm:$0xff]
        %v816 = vld [vmem:[%s810 + $0x28] sm:$0xff]
        %v817 = vld [vmem:[%s810 + $0x30] sm:$0xff]
        %v818 = vld [vmem:[%s810 + $0x38] sm:$0xff]
        %v820 = vunpack.c.l.b16 %v809
        %v821 = vpack.c.b16 %v820, %v372
        %v830 = vunpack.c.l.b16 %v811
        %v831 = vunpack.c.h.b16 %v811
        %v832 = vunpack.c.l.b16 %v812
        %v833 = vunpack.c.h.b16 %v812
        %v834 = vunpack.c.l.b16 %v813
        %v835 = vunpack.c.h.b16 %v813
        %v836 = vunpack.c.l.b16 %v814
        %v837 = vunpack.c.h.b16 %v814
        %v838 = vunpack.c.l.b16 %v815
        %v839 = vunpack.c.h.b16 %v815
        %v840 = vunpack.c.l.b16 %v816
        %v841 = vunpack.c.h.b16 %v816
        %v842 = vunpack.c.l.b16 %v817
        %v843 = vunpack.c.h.b16 %v817
        %v844 = vunpack.c.l.b16 %v818
        %v845 = vunpack.c.h.b16 %v818
        %v846 = vpack.c.b16 %v832, %v830
        %v847 = vpack.c.b16 %v833, %v831
        %v848 = vpack.c.b16 %v836, %v834
        %v849 = vpack.c.b16 %v837, %v835
        %v850 = vpack.c.b16 %v840, %v838
        %v851 = vpack.c.b16 %v841, %v839
        %v852 = vpack.c.b16 %v844, %v842
        %v853 = vpack.c.b16 %v845, %v843
        %v863 = vsel %vm305, %v821, 0
        %865 = vmatprep.subr.bf16.mxu0 %v847
        %866 = vmatpush1.bf16.msra.mxu0 %v846
        %867 = vmatprep.subr.bf16.mxu0 %v849
        %868 = vmatpush1.bf16.msra.mxu0 %v848
        %869 = vmatprep.subr.bf16.mxu0 %v851
        %870 = vmatpush1.bf16.msra.mxu0 %v850
        %871 = vmatprep.subr.bf16.mxu0 %v853
        %872 = vmatpush1.bf16.msra.mxu0 %v852
        %873 = vmatprep.subr.bf16.mxu0 0
        %874 = vmatpush1.bf16.msra.mxu0 0
        %875 = vmatprep.subr.bf16.mxu0 0
        %876 = vmatpush1.bf16.msra.mxu0 0
        %877 = vmatprep.subr.bf16.mxu0 0
        %878 = vmatpush1.bf16.msra.mxu0 0
        %879 = vmatprep.subr.bf16.mxu0 0
        %880 = vmatpush1.bf16.msra.mxu0 0
        %881 = vmatprep.subr.bf16.mxu0 0
        %882 = vmatpush1.bf16.msra.mxu0 0
        %883 = vmatprep.subr.bf16.mxu0 0
        %884 = vmatpush1.bf16.msra.mxu0 0
        %885 = vmatprep.subr.bf16.mxu0 0
        %886 = vmatpush1.bf16.msra.mxu0 0
        %887 = vmatprep.subr.bf16.mxu0 0
        %888 = vmatpush1.bf16.msra.mxu0 0
        %889 = vmatprep.subr.bf16.mxu0 0
        %890 = vmatpush1.bf16.msra.mxu0 0
        %891 = vmatprep.subr.bf16.mxu0 0
        %892 = vmatpush1.bf16.msra.mxu0 0
        %893 = vmatprep.subr.bf16.mxu0 0
        %894 = vmatpush1.bf16.msra.mxu0 0
        %895 = vmatprep.subr.bf16.mxu0 0
        %896 = vmatpush1.bf16.msra.mxu0 0
        %897 = vmatprep.mubr.bf16.mxu0 0
        %898 = vmatmul.mubr.bf16.gmra.mrb[0].mxu0 %v863
        %v899 = vpop.f32.mrb[0].mxu0
        %v900 = vadd.f32 0.0, %v899
        %v901 = vpop.f32.mrb[0].mxu0
        %v902 = vadd.f32 0.0, %v901
        %v903 = vpop.f32.mrb[0].mxu0
        %v904 = vadd.f32 0.0, %v903
        %v905 = vpop.f32.mrb[0].mxu0
        %v906 = vadd.f32 0.0, %v905
        %907 = vdwg.mxu0
        %v908 = vadd.f32 %v805, %v900
        %v909 = vadd.f32 %v806, %v902
        %v910 = vadd.f32 %v807, %v904
        %v911 = vadd.f32 %v808, %v906
        %v912 = vld [vmem:[#allocation2 + $0x8] sm:$0xe]
        %v913 = vld [vmem:[#allocation2 + $0x10] sm:$0xf]
        %v914 = vld [vmem:[#allocation2 + $0x18] sm:$0x1]
        %s915 = scalar_lea.vmem %s1, 384
        %v916 = vld [vmem:[%s915] sm:$0xff]
        %v917 = vld [vmem:[%s915 + $0x8] sm:$0xff]
        %v918 = vld [vmem:[%s915 + $0x10] sm:$0xff]
        %v919 = vld [vmem:[%s915 + $0x18] sm:$0xff]
        %v920 = vld [vmem:[%s915 + $0x20] sm:$0xff]
        %v921 = vld [vmem:[%s915 + $0x28] sm:$0xff]
        %v922 = vld [vmem:[%s915 + $0x30] sm:$0xff]
        %v923 = vld [vmem:[%s915 + $0x38] sm:$0xff]
        %v927 = vunpack.c.l.b16 %v912
        %v928 = vunpack.c.l.b16 %v913
        %v929 = vunpack.c.l.b16 %v914
        %v930 = vpack.c.b16 %v928, %v927
        %v931 = vpack.c.b16 %v929, %v929
        %v932 = vrot.slane %v930, 1
        %v933 = vrot.slane %v931, 1
        %v934 = vsel %vm376, %v932, %v933
        %v943 = vunpack.c.l.b16 %v916
        %v944 = vunpack.c.h.b16 %v916
        %v945 = vunpack.c.l.b16 %v917
        %v946 = vunpack.c.h.b16 %v917
        %v947 = vunpack.c.l.b16 %v918
        %v948 = vunpack.c.h.b16 %v918
        %v949 = vunpack.c.l.b16 %v919
        %v950 = vunpack.c.h.b16 %v919
        %v951 = vunpack.c.l.b16 %v920
        %v952 = vunpack.c.h.b16 %v920
        %v953 = vunpack.c.l.b16 %v921
        %v954 = vunpack.c.h.b16 %v921
        %v955 = vunpack.c.l.b16 %v922
        %v956 = vunpack.c.h.b16 %v922
        %v957 = vunpack.c.l.b16 %v923
        %v958 = vunpack.c.h.b16 %v923
        %v959 = vpack.c.b16 %v945, %v943
        %v960 = vpack.c.b16 %v946, %v944
        %v961 = vpack.c.b16 %v949, %v947
        %v962 = vpack.c.b16 %v950, %v948
        %v963 = vpack.c.b16 %v953, %v951
        %v964 = vpack.c.b16 %v954, %v952
        %v965 = vpack.c.b16 %v957, %v955
        %v966 = vpack.c.b16 %v958, %v956
        %v976 = vsel %vm305, %v934, 0
        %978 = vmatprep.subr.bf16.mxu0 %v960
        %979 = vmatpush1.bf16.msra.mxu0 %v959
        %980 = vmatprep.subr.bf16.mxu0 %v962
        %981 = vmatpush1.bf16.msra.mxu0 %v961
        %982 = vmatprep.subr.bf16.mxu0 %v964
        %983 = vmatpush1.bf16.msra.mxu0 %v963
        %984 = vmatprep.subr.bf16.mxu0 %v966
        %985 = vmatpush1.bf16.msra.mxu0 %v965
        %986 = vmatprep.subr.bf16.mxu0 0
        %987 = vmatpush1.bf16.msra.mxu0 0
        %988 = vmatprep.subr.bf16.mxu0 0
        %989 = vmatpush1.bf16.msra.mxu0 0
        %990 = vmatprep.subr.bf16.mxu0 0
        %991 = vmatpush1.bf16.msra.mxu0 0
        %992 = vmatprep.subr.bf16.mxu0 0
        %993 = vmatpush1.bf16.msra.mxu0 0
        %994 = vmatprep.subr.bf16.mxu0 0
        %995 = vmatpush1.bf16.msra.mxu0 0
        %996 = vmatprep.subr.bf16.mxu0 0
        %997 = vmatpush1.bf16.msra.mxu0 0
        %998 = vmatprep.subr.bf16.mxu0 0
        %999 = vmatpush1.bf16.msra.mxu0 0
        %1000 = vmatprep.subr.bf16.mxu0 0
        %1001 = vmatpush1.bf16.msra.mxu0 0
        %1002 = vmatprep.subr.bf16.mxu0 0
        %1003 = vmatpush1.bf16.msra.mxu0 0
        %1004 = vmatprep.subr.bf16.mxu0 0
        %1005 = vmatpush1.bf16.msra.mxu0 0
        %1006 = vmatprep.subr.bf16.mxu0 0
        %1007 = vmatpush1.bf16.msra.mxu0 0
        %1008 = vmatprep.subr.bf16.mxu0 0
        %1009 = vmatpush1.bf16.msra.mxu0 0
        %1010 = vmatprep.mubr.bf16.mxu0 0
        %1011 = vmatmul.mubr.bf16.gmra.mrb[0].mxu0 %v976
        %v1012 = vpop.f32.mrb[0].mxu0
        %v1013 = vadd.f32 0.0, %v1012
        %v1014 = vpop.f32.mrb[0].mxu0
        %v1015 = vadd.f32 0.0, %v1014
        %v1016 = vpop.f32.mrb[0].mxu0
        %v1017 = vadd.f32 0.0, %v1016
        %v1018 = vpop.f32.mrb[0].mxu0
        %v1019 = vadd.f32 0.0, %v1018
        %1020 = vdwg.mxu0
        %v1021 = vadd.f32 %v908, %v1013
        %v1022 = vadd.f32 %v909, %v1015
        %v1023 = vadd.f32 %v910, %v1017
        %v1024 = vadd.f32 %v911, %v1019
        %1025 = vst [vmem:[%s217] sm:$0xff] %v1021
        %1026 = vst.msk [vmem:[%s217 + $0x8] sm:$0xff] %vm305, %v1022
        %1027 = vst [vmem:[%s217 + $0x18] sm:$0xff] %v1023
        %1028 = vst.msk [vmem:[%s217 + $0x20] sm:$0xff] %vm305, %v1024
        %v1029 = vpack.c.bf16 %v1023, %v1021
        %v1030 = vpack.c.bf16 %v1024, %v1022
        %v1033 = vunpack.c.l.b16 %v1029
        %v1034 = vunpack.c.l.b16 %v1030
        %v1035 = vunpack.c.h.b16 %v1029
        %v1036 = vunpack.c.h.b16 %v1030
        %v1037 = vpack.c.b16 %v1034, %v1033
        %v1038 = vpack.c.b16 %v1036, %v1035
        %vm1039 = vsmask.f32 2304
        %vm1040 = vsmask.f32 6416
        %vm1041 = vmor %vm1039, %vm1040
        %v1043 = vshrl.u32 %v1037, 16
        %v1045 = vrot.slane %v1043, 5
        %v1046 = vshll.u32 %v1037, 16
        %v1048 = vrot.slane %v1046, 6
        %v1049 = vor.u32 %v1045, %v1048
        %v1050 = vrot.slane %v1049, 4
        %v1052 = vshrl.u32 %v1038, 16
        %v1054 = vrot.slane %v1052, 5
        %v1055 = vshll.u32 %v1038, 16
        %v1057 = vrot.slane %v1055, 6
        %v1058 = vor.u32 %v1054, %v1057
        %v1059 = vsel %vm1041, %v1050, %v1058
        %v1060 = vrot.slane %v1058, 4
        %1061 = vrot.lane.b32.xlu0 %v1049, 64
        %v1062 = vpop.permute.xlu0 %1061
        %1063 = vrot.lane.b32.xlu0 %v1059, 64
        %v1064 = vpop.permute.xlu0 %1063
        %1065 = vrot.lane.b32.xlu0 %v1060, 64
        %v1066 = vpop.permute.xlu0 %1065
        %v1067 = vrot.slane %v1062, 4
        %v1068 = vrot.slane %v1064, 4
        %v1069 = vrot.slane %v1066, 4
        %vm1070 = vcmask 523264
        %v1071 = vsel %vm1070, %v1067, %v1062
        %v1072 = vsel %vm1070, %v1068, %v1064
        %v1073 = vsel %vm1070, %v1069, %v1066
        %vm1077 = vcmask 1043970
        %vm1078 = vsmask.f32 7946
        %vm1079 = vmand %vm1077, %vm1078
        %vm1080 = vcmask 1047558
        %vm1081 = vsmask.f32 7962
        %vm1082 = vmand %vm1080, %vm1081
        %vm1083 = vmor %vm1082, %vm1079
        %v1084 = vld [vmem:[#allocation2] sm:$0xcc]
        %v1085 = vsel %vm1083, %v1071, %v1084
        %1086 = vst [vmem:[#allocation2] sm:$0xcc] %v1085
        %vm1087 = vcmask 1043968
        %vm1088 = vcmask 1047556
        %vm1089 = vmor %vm1088, %vm1087
        %1090 = vst.msk [vmem:[#allocation2 + $0x8] sm:$0xff] %vm1089, %v1072
        %vm1091 = vcmask 1042944
        %vm1092 = vmand %vm1091, %vm1039
        %vm1093 = vcmask 1046532
        %vm1094 = vsmask.f32 6400
        %vm1095 = vmand %vm1093, %vm1094
        %vm1096 = vmor %vm1095, %vm1092
        %v1097 = vld [vmem:[#allocation2 + $0x10] sm:$0x77]
        %v1098 = vsel %vm1096, %v1073, %v1097
        %1099 = vst [vmem:[#allocation2 + $0x10] sm:$0x77] %v1098
        %v1100 = vld [vmem:[%s4] sm:$0x3]
        %v1102 = vlaneseq
        %v1103 = vshrl.u32 %v1102, 7
        %v1104 = vsub.s32 0, %v1103
        %v1105 = vrot.slane %v1100, %v1104
        %v1106 = vlaneseq
        %v1107 = vshrl.u32 %v1106, 7
        %v1108 = vsub.s32 1, %v1107
        %v1109 = vrot.slane %v1100, %v1108
        %v1112 = vld [vmem:[#allocation2] sm:$0xff]
        %v1113 = vld [vmem:[#allocation2 + $0x8] sm:$0xff]
        %v1114 = vld [vmem:[%s2] sm:$0xff]
        %v1115 = vld [vmem:[%s2 + $0x8] sm:$0xff]
        %v1116 = vld [vmem:[%s2 + $0x10] sm:$0xff]
        %v1117 = vld [vmem:[%s2 + $0x18] sm:$0xff]
        %v1118 = vld [vmem:[%s2 + $0x20] sm:$0xff]
        %v1119 = vld [vmem:[%s2 + $0x28] sm:$0xff]
        %v1120 = vld [vmem:[%s2 + $0x30] sm:$0xff]
        %v1121 = vld [vmem:[%s2 + $0x38] sm:$0xff]
        %v1122 = vld [vmem:[%s2 + $0x40] sm:$0xff]
        %v1123 = vld [vmem:[%s2 + $0x48] sm:$0xff]
        %v1124 = vld [vmem:[%s2 + $0x50] sm:$0xff]
        %v1125 = vld [vmem:[%s2 + $0x58] sm:$0xff]
        %v1126 = vld [vmem:[%s2 + $0x60] sm:$0xff]
        %v1127 = vld [vmem:[%s2 + $0x68] sm:$0xff]
        %v1128 = vld [vmem:[%s2 + $0x70] sm:$0xff]
        %v1129 = vld [vmem:[%s2 + $0x78] sm:$0xff]
        %v1130 = vld [vmem:[%s2 + $0x80] sm:$0xff]
        %v1131 = vld [vmem:[%s2 + $0x88] sm:$0xff]
        %v1132 = vld [vmem:[%s2 + $0x90] sm:$0xff]
        %v1133 = vld [vmem:[%s2 + $0x98] sm:$0xff]
        %v1134 = vld [vmem:[%s2 + $0xa0] sm:$0xff]
        %v1135 = vld [vmem:[%s2 + $0xa8] sm:$0xff]
        %v1136 = vld [vmem:[%s2 + $0xb0] sm:$0xff]
        %v1137 = vld [vmem:[%s2 + $0xb8] sm:$0xff]
        %v1138 = vld [vmem:[%s2 + $0xc0] sm:$0xff]
        %v1139 = vld [vmem:[%s2 + $0xc8] sm:$0xff]
        %v1140 = vld [vmem:[%s2 + $0xd0] sm:$0xff]
        %v1141 = vld [vmem:[%s2 + $0xd8] sm:$0xff]
        %v1142 = vld [vmem:[%s2 + $0xe0] sm:$0xff]
        %v1143 = vld [vmem:[%s2 + $0xe8] sm:$0xff]
        %v1144 = vld [vmem:[%s2 + $0xf0] sm:$0xff]
        %v1145 = vld [vmem:[%s2 + $0xf8] sm:$0xff]
        %v1148 = vunpack.c.l.b16 %v1112
        %v1149 = vunpack.c.h.b16 %v1112
        %v1150 = vunpack.c.l.b16 %v1113
        %v1151 = vunpack.c.h.b16 %v1113
        %v1152 = vpack.c.b16 %v1150, %v1148
        %v1153 = vpack.c.b16 %v1151, %v1149
        %v1188 = vunpack.c.l.b16 %v1114
        %v1189 = vunpack.c.h.b16 %v1114
        %v1190 = vunpack.c.l.b16 %v1115
        %v1191 = vunpack.c.h.b16 %v1115
        %v1192 = vunpack.c.l.b16 %v1116
        %v1193 = vunpack.c.h.b16 %v1116
        %v1194 = vunpack.c.l.b16 %v1117
        %v1195 = vunpack.c.h.b16 %v1117
        %v1196 = vunpack.c.l.b16 %v1118
        %v1197 = vunpack.c.h.b16 %v1118
        %v1198 = vunpack.c.l.b16 %v1119
        %v1199 = vunpack.c.h.b16 %v1119
        %v1200 = vunpack.c.l.b16 %v1120
        %v1201 = vunpack.c.h.b16 %v1120
        %v1202 = vunpack.c.l.b16 %v1121
        %v1203 = vunpack.c.h.b16 %v1121
        %v1204 = vunpack.c.l.b16 %v1122
        %v1205 = vunpack.c.h.b16 %v1122
        %v1206 = vunpack.c.l.b16 %v1123
        %v1207 = vunpack.c.h.b16 %v1123
        %v1208 = vunpack.c.l.b16 %v1124
        %v1209 = vunpack.c.h.b16 %v1124
        %v1210 = vunpack.c.l.b16 %v1125
        %v1211 = vunpack.c.h.b16 %v1125
        %v1212 = vunpack.c.l.b16 %v1126
        %v1213 = vunpack.c.h.b16 %v1126
        %v1214 = vunpack.c.l.b16 %v1127
        %v1215 = vunpack.c.h.b16 %v1127
        %v1216 = vunpack.c.l.b16 %v1128
        %v1217 = vunpack.c.h.b16 %v1128
        %v1218 = vunpack.c.l.b16 %v1129
        %v1219 = vunpack.c.h.b16 %v1129
        %v1220 = vunpack.c.l.b16 %v1130
        %v1221 = vunpack.c.h.b16 %v1130
        %v1222 = vunpack.c.l.b16 %v1131
        %v1223 = vunpack.c.h.b16 %v1131
        %v1224 = vunpack.c.l.b16 %v1132
        %v1225 = vunpack.c.h.b16 %v1132
        %v1226 = vunpack.c.l.b16 %v1133
        %v1227 = vunpack.c.h.b16 %v1133
        %v1228 = vunpack.c.l.b16 %v1134
        %v1229 = vunpack.c.h.b16 %v1134
        %v1230 = vunpack.c.l.b16 %v1135
        %v1231 = vunpack.c.h.b16 %v1135
        %v1232 = vunpack.c.l.b16 %v1136
        %v1233 = vunpack.c.h.b16 %v1136
        %v1234 = vunpack.c.l.b16 %v1137
        %v1235 = vunpack.c.h.b16 %v1137
        %v1236 = vunpack.c.l.b16 %v1138
        %v1237 = vunpack.c.h.b16 %v1138
        %v1238 = vunpack.c.l.b16 %v1139
        %v1239 = vunpack.c.h.b16 %v1139
        %v1240 = vunpack.c.l.b16 %v1140
        %v1241 = vunpack.c.h.b16 %v1140
        %v1242 = vunpack.c.l.b16 %v1141
        %v1243 = vunpack.c.h.b16 %v1141
        %v1244 = vunpack.c.l.b16 %v1142
        %v1245 = vunpack.c.h.b16 %v1142
        %v1246 = vunpack.c.l.b16 %v1143
        %v1247 = vunpack.c.h.b16 %v1143
        %v1248 = vunpack.c.l.b16 %v1144
        %v1249 = vunpack.c.h.b16 %v1144
        %v1250 = vunpack.c.l.b16 %v1145
        %v1251 = vunpack.c.h.b16 %v1145
        %v1252 = vpack.c.b16 %v1190, %v1188
        %v1253 = vpack.c.b16 %v1191, %v1189
        %v1254 = vpack.c.b16 %v1194, %v1192
        %v1255 = vpack.c.b16 %v1195, %v1193
        %v1256 = vpack.c.b16 %v1198, %v1196
        %v1257 = vpack.c.b16 %v1199, %v1197
        %v1258 = vpack.c.b16 %v1202, %v1200
        %v1259 = vpack.c.b16 %v1203, %v1201
        %v1260 = vpack.c.b16 %v1206, %v1204
        %v1261 = vpack.c.b16 %v1207, %v1205
        %v1262 = vpack.c.b16 %v1210, %v1208
        %v1263 = vpack.c.b16 %v1211, %v1209
        %v1264 = vpack.c.b16 %v1214, %v1212
        %v1265 = vpack.c.b16 %v1215, %v1213
        %v1266 = vpack.c.b16 %v1218, %v1216
        %v1267 = vpack.c.b16 %v1219, %v1217
        %v1268 = vpack.c.b16 %v1222, %v1220
        %v1269 = vpack.c.b16 %v1223, %v1221
        %v1270 = vpack.c.b16 %v1226, %v1224
        %v1271 = vpack.c.b16 %v1227, %v1225
        %v1272 = vpack.c.b16 %v1230, %v1228
        %v1273 = vpack.c.b16 %v1231, %v1229
        %v1274 = vpack.c.b16 %v1234, %v1232
        %v1275 = vpack.c.b16 %v1235, %v1233
        %v1276 = vpack.c.b16 %v1238, %v1236
        %v1277 = vpack.c.b16 %v1239, %v1237
        %v1278 = vpack.c.b16 %v1242, %v1240
        %v1279 = vpack.c.b16 %v1243, %v1241
        %v1280 = vpack.c.b16 %v1246, %v1244
        %v1281 = vpack.c.b16 %v1247, %v1245
        %v1282 = vpack.c.b16 %v1250, %v1248
        %v1283 = vpack.c.b16 %v1251, %v1249
        %1316 = vmatprep.subr.bf16.mxu0 %v1253
        %1317 = vmatpush1.bf16.msra.mxu0 %v1252
        %1318 = vmatprep.subr.bf16.mxu0 %v1255
        %1319 = vmatpush1.bf16.msra.mxu0 %v1254
        %1320 = vmatprep.subr.bf16.mxu0 %v1257
        %1321 = vmatpush1.bf16.msra.mxu0 %v1256
        %1322 = vmatprep.subr.bf16.mxu0 %v1259
        %1323 = vmatpush1.bf16.msra.mxu0 %v1258
        %1324 = vmatprep.subr.bf16.mxu0 %v1261
        %1325 = vmatpush1.bf16.msra.mxu0 %v1260
        %1326 = vmatprep.subr.bf16.mxu0 %v1263
        %1327 = vmatpush1.bf16.msra.mxu0 %v1262
        %1328 = vmatprep.subr.bf16.mxu0 %v1265
        %1329 = vmatpush1.bf16.msra.mxu0 %v1264
        %1330 = vmatprep.subr.bf16.mxu0 %v1267
        %1331 = vmatpush1.bf16.msra.mxu0 %v1266
        %1332 = vmatprep.subr.bf16.mxu0 %v1269
        %1333 = vmatpush1.bf16.msra.mxu0 %v1268
        %1334 = vmatprep.subr.bf16.mxu0 %v1271
        %1335 = vmatpush1.bf16.msra.mxu0 %v1270
        %1336 = vmatprep.subr.bf16.mxu0 %v1273
        %1337 = vmatpush1.bf16.msra.mxu0 %v1272
        %1338 = vmatprep.subr.bf16.mxu0 %v1275
        %1339 = vmatpush1.bf16.msra.mxu0 %v1274
        %1340 = vmatprep.subr.bf16.mxu0 %v1277
        %1341 = vmatpush1.bf16.msra.mxu0 %v1276
        %1342 = vmatprep.subr.bf16.mxu0 %v1279
        %1343 = vmatpush1.bf16.msra.mxu0 %v1278
        %1344 = vmatprep.subr.bf16.mxu0 %v1281
        %1345 = vmatpush1.bf16.msra.mxu0 %v1280
        %1346 = vmatprep.subr.bf16.mxu0 %v1283
        %1347 = vmatpush1.bf16.msra.mxu0 %v1282
        %1348 = vmatprep.mubr.bf16.mxu0 %v1153
        %1349 = vmatmul.mubr.bf16.gmra.mrb[0].mxu0 %v1152
        %v1350 = vpop.f32.mrb[0].mxu0
        %v1351 = vadd.f32 0.0, %v1350
        %v1352 = vpop.f32.mrb[0].mxu0
        %v1353 = vadd.f32 0.0, %v1352
        %v1354 = vpop.f32.mrb[0].mxu0
        %v1355 = vadd.f32 0.0, %v1354
        %v1356 = vpop.f32.mrb[0].mxu0
        %v1357 = vadd.f32 0.0, %v1356
        %1358 = vdwg.mxu0
        %v1359 = vadd.f32 %v1105, %v1351
        %v1360 = vadd.f32 %v1109, %v1353
        %v1361 = vadd.f32 %v1105, %v1355
        %v1362 = vadd.f32 %v1109, %v1357
        %v1363 = vld [vmem:[#allocation2] sm:$0xee]
        %v1364 = vld [vmem:[#allocation2 + $0x8] sm:$0xff]
        %v1365 = vld [vmem:[#allocation2 + $0x10] sm:$0x11]
        %s1366 = scalar_lea.vmem %s2, 256
        %v1367 = vld [vmem:[%s1366] sm:$0xff]
        %v1368 = vld [vmem:[%s1366 + $0x8] sm:$0xff]
        %v1369 = vld [vmem:[%s1366 + $0x10] sm:$0xff]
        %v1370 = vld [vmem:[%s1366 + $0x18] sm:$0xff]
        %v1371 = vld [vmem:[%s1366 + $0x20] sm:$0xff]
        %v1372 = vld [vmem:[%s1366 + $0x28] sm:$0xff]
        %v1373 = vld [vmem:[%s1366 + $0x30] sm:$0xff]
        %v1374 = vld [vmem:[%s1366 + $0x38] sm:$0xff]
        %v1375 = vld [vmem:[%s1366 + $0x40] sm:$0xff]
        %v1376 = vld [vmem:[%s1366 + $0x48] sm:$0xff]
        %v1377 = vld [vmem:[%s1366 + $0x50] sm:$0xff]
        %v1378 = vld [vmem:[%s1366 + $0x58] sm:$0xff]
        %v1379 = vld [vmem:[%s1366 + $0x60] sm:$0xff]
        %v1380 = vld [vmem:[%s1366 + $0x68] sm:$0xff]
        %v1381 = vld [vmem:[%s1366 + $0x70] sm:$0xff]
        %v1382 = vld [vmem:[%s1366 + $0x78] sm:$0xff]
        %v1383 = vld [vmem:[%s1366 + $0x80] sm:$0xff]
        %v1384 = vld [vmem:[%s1366 + $0x88] sm:$0xff]
        %v1385 = vld [vmem:[%s1366 + $0x90] sm:$0xff]
        %v1386 = vld [vmem:[%s1366 + $0x98] sm:$0xff]
        %v1387 = vld [vmem:[%s1366 + $0xa0] sm:$0xff]
        %v1388 = vld [vmem:[%s1366 + $0xa8] sm:$0xff]
        %v1389 = vld [vmem:[%s1366 + $0xb0] sm:$0xff]
        %v1390 = vld [vmem:[%s1366 + $0xb8] sm:$0xff]
        %v1391 = vld [vmem:[%s1366 + $0xc0] sm:$0xff]
        %v1392 = vld [vmem:[%s1366 + $0xc8] sm:$0xff]
        %v1393 = vld [vmem:[%s1366 + $0xd0] sm:$0xff]
        %v1394 = vld [vmem:[%s1366 + $0xd8] sm:$0xff]
        %v1395 = vld [vmem:[%s1366 + $0xe0] sm:$0xff]
        %v1396 = vld [vmem:[%s1366 + $0xe8] sm:$0xff]
        %v1397 = vld [vmem:[%s1366 + $0xf0] sm:$0xff]
        %v1398 = vld [vmem:[%s1366 + $0xf8] sm:$0xff]
        %v1402 = vunpack.c.l.b16 %v1363
        %v1403 = vunpack.c.h.b16 %v1363
        %v1404 = vunpack.c.l.b16 %v1364
        %v1405 = vunpack.c.h.b16 %v1364
        %v1406 = vunpack.c.l.b16 %v1365
        %v1407 = vunpack.c.h.b16 %v1365
        %v1408 = vpack.c.b16 %v1404, %v1402
        %v1409 = vpack.c.b16 %v1405, %v1403
        %v1410 = vpack.c.b16 %v1406, %v1406
        %v1411 = vpack.c.b16 %v1407, %v1407
        %v1412 = vrot.slane %v1408, 1
        %v1413 = vrot.slane %v1410, 1
        %v1414 = vsel %vm376, %v1412, %v1413
        %v1415 = vrot.slane %v1409, 1
        %v1416 = vrot.slane %v1411, 1
        %v1417 = vsel %vm376, %v1415, %v1416
        %v1452 = vunpack.c.l.b16 %v1367
        %v1453 = vunpack.c.h.b16 %v1367
        %v1454 = vunpack.c.l.b16 %v1368
        %v1455 = vunpack.c.h.b16 %v1368
        %v1456 = vunpack.c.l.b16 %v1369
        %v1457 = vunpack.c.h.b16 %v1369
        %v1458 = vunpack.c.l.b16 %v1370
        %v1459 = vunpack.c.h.b16 %v1370
        %v1460 = vunpack.c.l.b16 %v1371
        %v1461 = vunpack.c.h.b16 %v1371
        %v1462 = vunpack.c.l.b16 %v1372
        %v1463 = vunpack.c.h.b16 %v1372
        %v1464 = vunpack.c.l.b16 %v1373
        %v1465 = vunpack.c.h.b16 %v1373
        %v1466 = vunpack.c.l.b16 %v1374
        %v1467 = vunpack.c.h.b16 %v1374
        %v1468 = vunpack.c.l.b16 %v1375
        %v1469 = vunpack.c.h.b16 %v1375
        %v1470 = vunpack.c.l.b16 %v1376
        %v1471 = vunpack.c.h.b16 %v1376
        %v1472 = vunpack.c.l.b16 %v1377
        %v1473 = vunpack.c.h.b16 %v1377
        %v1474 = vunpack.c.l.b16 %v1378
        %v1475 = vunpack.c.h.b16 %v1378
        %v1476 = vunpack.c.l.b16 %v1379
        %v1477 = vunpack.c.h.b16 %v1379
        %v1478 = vunpack.c.l.b16 %v1380
        %v1479 = vunpack.c.h.b16 %v1380
        %v1480 = vunpack.c.l.b16 %v1381
        %v1481 = vunpack.c.h.b16 %v1381
        %v1482 = vunpack.c.l.b16 %v1382
        %v1483 = vunpack.c.h.b16 %v1382
        %v1484 = vunpack.c.l.b16 %v1383
        %v1485 = vunpack.c.h.b16 %v1383
        %v1486 = vunpack.c.l.b16 %v1384
        %v1487 = vunpack.c.h.b16 %v1384
        %v1488 = vunpack.c.l.b16 %v1385
        %v1489 = vunpack.c.h.b16 %v1385
        %v1490 = vunpack.c.l.b16 %v1386
        %v1491 = vunpack.c.h.b16 %v1386
        %v1492 = vunpack.c.l.b16 %v1387
        %v1493 = vunpack.c.h.b16 %v1387
        %v1494 = vunpack.c.l.b16 %v1388
        %v1495 = vunpack.c.h.b16 %v1388
        %v1496 = vunpack.c.l.b16 %v1389
        %v1497 = vunpack.c.h.b16 %v1389
        %v1498 = vunpack.c.l.b16 %v1390
        %v1499 = vunpack.c.h.b16 %v1390
        %v1500 = vunpack.c.l.b16 %v1391
        %v1501 = vunpack.c.h.b16 %v1391
        %v1502 = vunpack.c.l.b16 %v1392
        %v1503 = vunpack.c.h.b16 %v1392
        %v1504 = vunpack.c.l.b16 %v1393
        %v1505 = vunpack.c.h.b16 %v1393
        %v1506 = vunpack.c.l.b16 %v1394
        %v1507 = vunpack.c.h.b16 %v1394
        %v1508 = vunpack.c.l.b16 %v1395
        %v1509 = vunpack.c.h.b16 %v1395
        %v1510 = vunpack.c.l.b16 %v1396
        %v1511 = vunpack.c.h.b16 %v1396
        %v1512 = vunpack.c.l.b16 %v1397
        %v1513 = vunpack.c.h.b16 %v1397
        %v1514 = vunpack.c.l.b16 %v1398
        %v1515 = vunpack.c.h.b16 %v1398
        %v1516 = vpack.c.b16 %v1454, %v1452
        %v1517 = vpack.c.b16 %v1455, %v1453
        %v1518 = vpack.c.b16 %v1458, %v1456
        %v1519 = vpack.c.b16 %v1459, %v1457
        %v1520 = vpack.c.b16 %v1462, %v1460
        %v1521 = vpack.c.b16 %v1463, %v1461
        %v1522 = vpack.c.b16 %v1466, %v1464
        %v1523 = vpack.c.b16 %v1467, %v1465
        %v1524 = vpack.c.b16 %v1470, %v1468
        %v1525 = vpack.c.b16 %v1471, %v1469
        %v1526 = vpack.c.b16 %v1474, %v1472
        %v1527 = vpack.c.b16 %v1475, %v1473
        %v1528 = vpack.c.b16 %v1478, %v1476
        %v1529 = vpack.c.b16 %v1479, %v1477
        %v1530 = vpack.c.b16 %v1482, %v1480
        %v1531 = vpack.c.b16 %v1483, %v1481
        %v1532 = vpack.c.b16 %v1486, %v1484
        %v1533 = vpack.c.b16 %v1487, %v1485
        %v1534 = vpack.c.b16 %v1490, %v1488
        %v1535 = vpack.c.b16 %v1491, %v1489
        %v1536 = vpack.c.b16 %v1494, %v1492
        %v1537 = vpack.c.b16 %v1495, %v1493
        %v1538 = vpack.c.b16 %v1498, %v1496
        %v1539 = vpack.c.b16 %v1499, %v1497
        %v1540 = vpack.c.b16 %v1502, %v1500
        %v1541 = vpack.c.b16 %v1503, %v1501
        %v1542 = vpack.c.b16 %v1506, %v1504
        %v1543 = vpack.c.b16 %v1507, %v1505
        %v1544 = vpack.c.b16 %v1510, %v1508
        %v1545 = vpack.c.b16 %v1511, %v1509
        %v1546 = vpack.c.b16 %v1514, %v1512
        %v1547 = vpack.c.b16 %v1515, %v1513
        %1580 = vmatprep.subr.bf16.mxu0 %v1517
        %1581 = vmatpush1.bf16.msra.mxu0 %v1516
        %1582 = vmatprep.subr.bf16.mxu0 %v1519
        %1583 = vmatpush1.bf16.msra.mxu0 %v1518
        %1584 = vmatprep.subr.bf16.mxu0 %v1521
        %1585 = vmatpush1.bf16.msra.mxu0 %v1520
        %1586 = vmatprep.subr.bf16.mxu0 %v1523
        %1587 = vmatpush1.bf16.msra.mxu0 %v1522
        %1588 = vmatprep.subr.bf16.mxu0 %v1525
        %1589 = vmatpush1.bf16.msra.mxu0 %v1524
        %1590 = vmatprep.subr.bf16.mxu0 %v1527
        %1591 = vmatpush1.bf16.msra.mxu0 %v1526
        %1592 = vmatprep.subr.bf16.mxu0 %v1529
        %1593 = vmatpush1.bf16.msra.mxu0 %v1528
        %1594 = vmatprep.subr.bf16.mxu0 %v1531
        %1595 = vmatpush1.bf16.msra.mxu0 %v1530
        %1596 = vmatprep.subr.bf16.mxu0 %v1533
        %1597 = vmatpush1.bf16.msra.mxu0 %v1532
        %1598 = vmatprep.subr.bf16.mxu0 %v1535
        %1599 = vmatpush1.bf16.msra.mxu0 %v1534
        %1600 = vmatprep.subr.bf16.mxu0 %v1537
        %1601 = vmatpush1.bf16.msra.mxu0 %v1536
        %1602 = vmatprep.subr.bf16.mxu0 %v1539
        %1603 = vmatpush1.bf16.msra.mxu0 %v1538
        %1604 = vmatprep.subr.bf16.mxu0 %v1541
        %1605 = vmatpush1.bf16.msra.mxu0 %v1540
        %1606 = vmatprep.subr.bf16.mxu0 %v1543
        %1607 = vmatpush1.bf16.msra.mxu0 %v1542
        %1608 = vmatprep.subr.bf16.mxu0 %v1545
        %1609 = vmatpush1.bf16.msra.mxu0 %v1544
        %1610 = vmatprep.subr.bf16.mxu0 %v1547
        %1611 = vmatpush1.bf16.msra.mxu0 %v1546
        %1612 = vmatprep.mubr.bf16.mxu0 %v1417
        %1613 = vmatmul.mubr.bf16.gmra.mrb[0].mxu0 %v1414
        %v1614 = vpop.f32.mrb[0].mxu0
        %v1615 = vadd.f32 0.0, %v1614
        %v1616 = vpop.f32.mrb[0].mxu0
        %v1617 = vadd.f32 0.0, %v1616
        %v1618 = vpop.f32.mrb[0].mxu0
        %v1619 = vadd.f32 0.0, %v1618
        %v1620 = vpop.f32.mrb[0].mxu0
        %v1621 = vadd.f32 0.0, %v1620
        %1622 = vdwg.mxu0
        %v1623 = vadd.f32 %v1359, %v1615
        %v1624 = vadd.f32 %v1360, %v1617
        %v1625 = vadd.f32 %v1361, %v1619
        %v1626 = vadd.f32 %v1362, %v1621
        %v1627 = vld [vmem:[#allocation2] sm:$0xcc]
        %v1628 = vld [vmem:[#allocation2 + $0x10] sm:$0x33]
        %s1629 = scalar_lea.vmem %s2, 512
        %v1630 = vld [vmem:[%s1629] sm:$0xff]
        %v1631 = vld [vmem:[%s1629 + $0x8] sm:$0xff]
        %v1632 = vld [vmem:[%s1629 + $0x10] sm:$0xff]
        %v1633 = vld [vmem:[%s1629 + $0x18] sm:$0xff]
        %v1634 = vld [vmem:[%s1629 + $0x20] sm:$0xff]
        %v1635 = vld [vmem:[%s1629 + $0x28] sm:$0xff]
        %v1636 = vld [vmem:[%s1629 + $0x30] sm:$0xff]
        %v1637 = vld [vmem:[%s1629 + $0x38] sm:$0xff]
        %v1638 = vld [vmem:[%s1629 + $0x40] sm:$0xff]
        %v1639 = vld [vmem:[%s1629 + $0x48] sm:$0xff]
        %v1640 = vld [vmem:[%s1629 + $0x50] sm:$0xff]
        %v1641 = vld [vmem:[%s1629 + $0x58] sm:$0xff]
        %v1642 = vld [vmem:[%s1629 + $0x60] sm:$0xff]
        %v1643 = vld [vmem:[%s1629 + $0x68] sm:$0xff]
        %v1644 = vld [vmem:[%s1629 + $0x70] sm:$0xff]
        %v1645 = vld [vmem:[%s1629 + $0x78] sm:$0xff]
        %v1646 = vld [vmem:[%s1629 + $0x80] sm:$0xff]
        %v1647 = vld [vmem:[%s1629 + $0x88] sm:$0xff]
        %v1648 = vld [vmem:[%s1629 + $0x90] sm:$0xff]
        %v1649 = vld [vmem:[%s1629 + $0x98] sm:$0xff]
        %v1650 = vld [vmem:[%s1629 + $0xa0] sm:$0xff]
        %v1651 = vld [vmem:[%s1629 + $0xa8] sm:$0xff]
        %v1652 = vld [vmem:[%s1629 + $0xb0] sm:$0xff]
        %v1653 = vld [vmem:[%s1629 + $0xb8] sm:$0xff]
        %v1654 = vld [vmem:[%s1629 + $0xc0] sm:$0xff]
        %v1655 = vld [vmem:[%s1629 + $0xc8] sm:$0xff]
        %v1656 = vld [vmem:[%s1629 + $0xd0] sm:$0xff]
        %v1657 = vld [vmem:[%s1629 + $0xd8] sm:$0xff]
        %v1658 = vld [vmem:[%s1629 + $0xe0] sm:$0xff]
        %v1659 = vld [vmem:[%s1629 + $0xe8] sm:$0xff]
        %v1660 = vld [vmem:[%s1629 + $0xf0] sm:$0xff]
        %v1661 = vld [vmem:[%s1629 + $0xf8] sm:$0xff]
        %v1664 = vunpack.c.l.b16 %v1627
        %v1665 = vunpack.c.h.b16 %v1627
        %v1666 = vunpack.c.l.b16 %v1628
        %v1667 = vunpack.c.h.b16 %v1628
        %v1668 = vpack.c.b16 %v1404, %v1664
        %v1669 = vpack.c.b16 %v1405, %v1665
        %v1670 = vpack.c.b16 %v1666, %v1666
        %v1671 = vpack.c.b16 %v1667, %v1667
        %v1672 = vrot.slane %v1668, 2
        %v1673 = vrot.slane %v1670, 2
        %v1674 = vsel %vm487, %v1672, %v1673
        %v1675 = vrot.slane %v1669, 2
        %v1676 = vrot.slane %v1671, 2
        %v1677 = vsel %vm487, %v1675, %v1676
        %v1712 = vunpack.c.l.b16 %v1630
        %v1713 = vunpack.c.h.b16 %v1630
        %v1714 = vunpack.c.l.b16 %v1631
        %v1715 = vunpack.c.h.b16 %v1631
        %v1716 = vunpack.c.l.b16 %v1632
        %v1717 = vunpack.c.h.b16 %v1632
        %v1718 = vunpack.c.l.b16 %v1633
        %v1719 = vunpack.c.h.b16 %v1633
        %v1720 = vunpack.c.l.b16 %v1634
        %v1721 = vunpack.c.h.b16 %v1634
        %v1722 = vunpack.c.l.b16 %v1635
        %v1723 = vunpack.c.h.b16 %v1635
        %v1724 = vunpack.c.l.b16 %v1636
        %v1725 = vunpack.c.h.b16 %v1636
        %v1726 = vunpack.c.l.b16 %v1637
        %v1727 = vunpack.c.h.b16 %v1637
        %v1728 = vunpack.c.l.b16 %v1638
        %v1729 = vunpack.c.h.b16 %v1638
        %v1730 = vunpack.c.l.b16 %v1639
        %v1731 = vunpack.c.h.b16 %v1639
        %v1732 = vunpack.c.l.b16 %v1640
        %v1733 = vunpack.c.h.b16 %v1640
        %v1734 = vunpack.c.l.b16 %v1641
        %v1735 = vunpack.c.h.b16 %v1641
        %v1736 = vunpack.c.l.b16 %v1642
        %v1737 = vunpack.c.h.b16 %v1642
        %v1738 = vunpack.c.l.b16 %v1643
        %v1739 = vunpack.c.h.b16 %v1643
        %v1740 = vunpack.c.l.b16 %v1644
        %v1741 = vunpack.c.h.b16 %v1644
        %v1742 = vunpack.c.l.b16 %v1645
        %v1743 = vunpack.c.h.b16 %v1645
        %v1744 = vunpack.c.l.b16 %v1646
        %v1745 = vunpack.c.h.b16 %v1646
        %v1746 = vunpack.c.l.b16 %v1647
        %v1747 = vunpack.c.h.b16 %v1647
        %v1748 = vunpack.c.l.b16 %v1648
        %v1749 = vunpack.c.h.b16 %v1648
        %v1750 = vunpack.c.l.b16 %v1649
        %v1751 = vunpack.c.h.b16 %v1649
        %v1752 = vunpack.c.l.b16 %v1650
        %v1753 = vunpack.c.h.b16 %v1650
        %v1754 = vunpack.c.l.b16 %v1651
        %v1755 = vunpack.c.h.b16 %v1651
        %v1756 = vunpack.c.l.b16 %v1652
        %v1757 = vunpack.c.h.b16 %v1652
        %v1758 = vunpack.c.l.b16 %v1653
        %v1759 = vunpack.c.h.b16 %v1653
        %v1760 = vunpack.c.l.b16 %v1654
        %v1761 = vunpack.c.h.b16 %v1654
        %v1762 = vunpack.c.l.b16 %v1655
        %v1763 = vunpack.c.h.b16 %v1655
        %v1764 = vunpack.c.l.b16 %v1656
        %v1765 = vunpack.c.h.b16 %v1656
        %v1766 = vunpack.c.l.b16 %v1657
        %v1767 = vunpack.c.h.b16 %v1657
        %v1768 = vunpack.c.l.b16 %v1658
        %v1769 = vunpack.c.h.b16 %v1658
        %v1770 = vunpack.c.l.b16 %v1659
        %v1771 = vunpack.c.h.b16 %v1659
        %v1772 = vunpack.c.l.b16 %v1660
        %v1773 = vunpack.c.h.b16 %v1660
        %v1774 = vunpack.c.l.b16 %v1661
        %v1775 = vunpack.c.h.b16 %v1661
        %v1776 = vpack.c.b16 %v1714, %v1712
        %v1777 = vpack.c.b16 %v1715, %v1713
        %v1778 = vpack.c.b16 %v1718, %v1716
        %v1779 = vpack.c.b16 %v1719, %v1717
        %v1780 = vpack.c.b16 %v1722, %v1720
        %v1781 = vpack.c.b16 %v1723, %v1721
        %v1782 = vpack.c.b16 %v1726, %v1724
        %v1783 = vpack.c.b16 %v1727, %v1725
        %v1784 = vpack.c.b16 %v1730, %v1728
        %v1785 = vpack.c.b16 %v1731, %v1729
        %v1786 = vpack.c.b16 %v1734, %v1732
        %v1787 = vpack.c.b16 %v1735, %v1733
        %v1788 = vpack.c.b16 %v1738, %v1736
        %v1789 = vpack.c.b16 %v1739, %v1737
        %v1790 = vpack.c.b16 %v1742, %v1740
        %v1791 = vpack.c.b16 %v1743, %v1741
        %v1792 = vpack.c.b16 %v1746, %v1744
        %v1793 = vpack.c.b16 %v1747, %v1745
        %v1794 = vpack.c.b16 %v1750, %v1748
        %v1795 = vpack.c.b16 %v1751, %v1749
        %v1796 = vpack.c.b16 %v1754, %v1752
        %v1797 = vpack.c.b16 %v1755, %v1753
        %v1798 = vpack.c.b16 %v1758, %v1756
        %v1799 = vpack.c.b16 %v1759, %v1757
        %v1800 = vpack.c.b16 %v1762, %v1760
        %v1801 = vpack.c.b16 %v1763, %v1761
        %v1802 = vpack.c.b16 %v1766, %v1764
        %v1803 = vpack.c.b16 %v1767, %v1765
        %v1804 = vpack.c.b16 %v1770, %v1768
        %v1805 = vpack.c.b16 %v1771, %v1769
        %v1806 = vpack.c.b16 %v1774, %v1772
        %v1807 = vpack.c.b16 %v1775, %v1773
        %1840 = vmatprep.subr.bf16.mxu0 %v1777
        %1841 = vmatpush1.bf16.msra.mxu0 %v1776
        %1842 = vmatprep.subr.bf16.mxu0 %v1779
        %1843 = vmatpush1.bf16.msra.mxu0 %v1778
        %1844 = vmatprep.subr.bf16.mxu0 %v1781
        %1845 = vmatpush1.bf16.msra.mxu0 %v1780
        %1846 = vmatprep.subr.bf16.mxu0 %v1783
        %1847 = vmatpush1.bf16.msra.mxu0 %v1782
        %1848 = vmatprep.subr.bf16.mxu0 %v1785
        %1849 = vmatpush1.bf16.msra.mxu0 %v1784
        %1850 = vmatprep.subr.bf16.mxu0 %v1787
        %1851 = vmatpush1.bf16.msra.mxu0 %v1786
        %1852 = vmatprep.subr.bf16.mxu0 %v1789
        %1853 = vmatpush1.bf16.msra.mxu0 %v1788
        %1854 = vmatprep.subr.bf16.mxu0 %v1791
        %1855 = vmatpush1.bf16.msra.mxu0 %v1790
        %1856 = vmatprep.subr.bf16.mxu0 %v1793
        %1857 = vmatpush1.bf16.msra.mxu0 %v1792
        %1858 = vmatprep.subr.bf16.mxu0 %v1795
        %1859 = vmatpush1.bf16.msra.mxu0 %v1794
        %1860 = vmatprep.subr.bf16.mxu0 %v1797
        %1861 = vmatpush1.bf16.msra.mxu0 %v1796
        %1862 = vmatprep.subr.bf16.mxu0 %v1799
        %1863 = vmatpush1.bf16.msra.mxu0 %v1798
        %1864 = vmatprep.subr.bf16.mxu0 %v1801
        %1865 = vmatpush1.bf16.msra.mxu0 %v1800
        %1866 = vmatprep.subr.bf16.mxu0 %v1803
        %1867 = vmatpush1.bf16.msra.mxu0 %v1802
        %1868 = vmatprep.subr.bf16.mxu0 %v1805
        %1869 = vmatpush1.bf16.msra.mxu0 %v1804
        %1870 = vmatprep.subr.bf16.mxu0 %v1807
        %1871 = vmatpush1.bf16.msra.mxu0 %v1806
        %1872 = vmatprep.mubr.bf16.mxu0 %v1677
        %1873 = vmatmul.mubr.bf16.gmra.mrb[0].mxu0 %v1674
        %v1874 = vpop.f32.mrb[0].mxu0
        %v1875 = vadd.f32 0.0, %v1874
        %v1876 = vpop.f32.mrb[0].mxu0
        %v1877 = vadd.f32 0.0, %v1876
        %v1878 = vpop.f32.mrb[0].mxu0
        %v1879 = vadd.f32 0.0, %v1878
        %v1880 = vpop.f32.mrb[0].mxu0
        %v1881 = vadd.f32 0.0, %v1880
        %1882 = vdwg.mxu0
        %v1883 = vadd.f32 %v1623, %v1875
        %v1884 = vadd.f32 %v1624, %v1877
        %v1885 = vadd.f32 %v1625, %v1879
        %v1886 = vadd.f32 %v1626, %v1881
        %v1887 = vld [vmem:[#allocation2 + $0x10] sm:$0x77]
        %s1888 = scalar_lea.vmem %s2, 768
        %v1889 = vld [vmem:[%s1888] sm:$0xff]
        %v1890 = vld [vmem:[%s1888 + $0x8] sm:$0xff]
        %v1891 = vld [vmem:[%s1888 + $0x10] sm:$0xff]
        %v1892 = vld [vmem:[%s1888 + $0x18] sm:$0xff]
        %v1893 = vld [vmem:[%s1888 + $0x20] sm:$0xff]
        %v1894 = vld [vmem:[%s1888 + $0x28] sm:$0xff]
        %v1895 = vld [vmem:[%s1888 + $0x30] sm:$0xff]
        %v1896 = vld [vmem:[%s1888 + $0x38] sm:$0xff]
        %v1897 = vld [vmem:[%s1888 + $0x40] sm:$0xff]
        %v1898 = vld [vmem:[%s1888 + $0x48] sm:$0xff]
        %v1899 = vld [vmem:[%s1888 + $0x50] sm:$0xff]
        %v1900 = vld [vmem:[%s1888 + $0x58] sm:$0xff]
        %v1901 = vld [vmem:[%s1888 + $0x60] sm:$0xff]
        %v1902 = vld [vmem:[%s1888 + $0x68] sm:$0xff]
        %v1903 = vld [vmem:[%s1888 + $0x70] sm:$0xff]
        %v1904 = vld [vmem:[%s1888 + $0x78] sm:$0xff]
        %v1905 = vld [vmem:[%s1888 + $0x80] sm:$0xff]
        %v1906 = vld [vmem:[%s1888 + $0x88] sm:$0xff]
        %v1907 = vld [vmem:[%s1888 + $0x90] sm:$0xff]
        %v1908 = vld [vmem:[%s1888 + $0x98] sm:$0xff]
        %v1909 = vld [vmem:[%s1888 + $0xa0] sm:$0xff]
        %v1910 = vld [vmem:[%s1888 + $0xa8] sm:$0xff]
        %v1911 = vld [vmem:[%s1888 + $0xb0] sm:$0xff]
        %v1912 = vld [vmem:[%s1888 + $0xb8] sm:$0xff]
        %v1913 = vld [vmem:[%s1888 + $0xc0] sm:$0xff]
        %v1914 = vld [vmem:[%s1888 + $0xc8] sm:$0xff]
        %v1915 = vld [vmem:[%s1888 + $0xd0] sm:$0xff]
        %v1916 = vld [vmem:[%s1888 + $0xd8] sm:$0xff]
        %v1917 = vld [vmem:[%s1888 + $0xe0] sm:$0xff]
        %v1918 = vld [vmem:[%s1888 + $0xe8] sm:$0xff]
        %v1919 = vld [vmem:[%s1888 + $0xf0] sm:$0xff]
        %v1920 = vld [vmem:[%s1888 + $0xf8] sm:$0xff]
        %v1922 = vunpack.c.l.b16 %v1887
        %v1923 = vunpack.c.h.b16 %v1887
        %v1924 = vpack.c.b16 %v1922, %v1922
        %v1925 = vpack.c.b16 %v1923, %v1923
        %v1927 = vshrl.u32 %v1668, 16
        %v1929 = vrot.slane %v1927, 2
        %v1930 = vshll.u32 %v1668, 16
        %v1932 = vrot.slane %v1930, 3
        %v1933 = vor.u32 %v1929, %v1932
        %v1935 = vshrl.u32 %v1924, 16
        %v1937 = vrot.slane %v1935, 2
        %v1938 = vshll.u32 %v1924, 16
        %v1940 = vrot.slane %v1938, 3
        %v1941 = vor.u32 %v1937, %v1940
        %v1942 = vsel %vm594, %v1933, %v1941
        %v1944 = vshrl.u32 %v1669, 16
        %v1946 = vrot.slane %v1944, 2
        %v1947 = vshll.u32 %v1669, 16
        %v1949 = vrot.slane %v1947, 3
        %v1950 = vor.u32 %v1946, %v1949
        %v1952 = vshrl.u32 %v1925, 16
        %v1954 = vrot.slane %v1952, 2
        %v1955 = vshll.u32 %v1925, 16
        %v1957 = vrot.slane %v1955, 3
        %v1958 = vor.u32 %v1954, %v1957
        %v1959 = vsel %vm594, %v1950, %v1958
        %v1994 = vunpack.c.l.b16 %v1889
        %v1995 = vunpack.c.h.b16 %v1889
        %v1996 = vunpack.c.l.b16 %v1890
        %v1997 = vunpack.c.h.b16 %v1890
        %v1998 = vunpack.c.l.b16 %v1891
        %v1999 = vunpack.c.h.b16 %v1891
        %v2000 = vunpack.c.l.b16 %v1892
        %v2001 = vunpack.c.h.b16 %v1892
        %v2002 = vunpack.c.l.b16 %v1893
        %v2003 = vunpack.c.h.b16 %v1893
        %v2004 = vunpack.c.l.b16 %v1894
        %v2005 = vunpack.c.h.b16 %v1894
        %v2006 = vunpack.c.l.b16 %v1895
        %v2007 = vunpack.c.h.b16 %v1895
        %v2008 = vunpack.c.l.b16 %v1896
        %v2009 = vunpack.c.h.b16 %v1896
        %v2010 = vunpack.c.l.b16 %v1897
        %v2011 = vunpack.c.h.b16 %v1897
        %v2012 = vunpack.c.l.b16 %v1898
        %v2013 = vunpack.c.h.b16 %v1898
        %v2014 = vunpack.c.l.b16 %v1899
        %v2015 = vunpack.c.h.b16 %v1899
        %v2016 = vunpack.c.l.b16 %v1900
        %v2017 = vunpack.c.h.b16 %v1900
        %v2018 = vunpack.c.l.b16 %v1901
        %v2019 = vunpack.c.h.b16 %v1901
        %v2020 = vunpack.c.l.b16 %v1902
        %v2021 = vunpack.c.h.b16 %v1902
        %v2022 = vunpack.c.l.b16 %v1903
        %v2023 = vunpack.c.h.b16 %v1903
        %v2024 = vunpack.c.l.b16 %v1904
        %v2025 = vunpack.c.h.b16 %v1904
        %v2026 = vunpack.c.l.b16 %v1905
        %v2027 = vunpack.c.h.b16 %v1905
        %v2028 = vunpack.c.l.b16 %v1906
        %v2029 = vunpack.c.h.b16 %v1906
        %v2030 = vunpack.c.l.b16 %v1907
        %v2031 = vunpack.c.h.b16 %v1907
        %v2032 = vunpack.c.l.b16 %v1908
        %v2033 = vunpack.c.h.b16 %v1908
        %v2034 = vunpack.c.l.b16 %v1909
        %v2035 = vunpack.c.h.b16 %v1909
        %v2036 = vunpack.c.l.b16 %v1910
        %v2037 = vunpack.c.h.b16 %v1910
        %v2038 = vunpack.c.l.b16 %v1911
        %v2039 = vunpack.c.h.b16 %v1911
        %v2040 = vunpack.c.l.b16 %v1912
        %v2041 = vunpack.c.h.b16 %v1912
        %v2042 = vunpack.c.l.b16 %v1913
        %v2043 = vunpack.c.h.b16 %v1913
        %v2044 = vunpack.c.l.b16 %v1914
        %v2045 = vunpack.c.h.b16 %v1914
        %v2046 = vunpack.c.l.b16 %v1915
        %v2047 = vunpack.c.h.b16 %v1915
        %v2048 = vunpack.c.l.b16 %v1916
        %v2049 = vunpack.c.h.b16 %v1916
        %v2050 = vunpack.c.l.b16 %v1917
        %v2051 = vunpack.c.h.b16 %v1917
        %v2052 = vunpack.c.l.b16 %v1918
        %v2053 = vunpack.c.h.b16 %v1918
        %v2054 = vunpack.c.l.b16 %v1919
        %v2055 = vunpack.c.h.b16 %v1919
        %v2056 = vunpack.c.l.b16 %v1920
        %v2057 = vunpack.c.h.b16 %v1920
        %v2058 = vpack.c.b16 %v1996, %v1994
        %v2059 = vpack.c.b16 %v1997, %v1995
        %v2060 = vpack.c.b16 %v2000, %v1998
        %v2061 = vpack.c.b16 %v2001, %v1999
        %v2062 = vpack.c.b16 %v2004, %v2002
        %v2063 = vpack.c.b16 %v2005, %v2003
        %v2064 = vpack.c.b16 %v2008, %v2006
        %v2065 = vpack.c.b16 %v2009, %v2007
        %v2066 = vpack.c.b16 %v2012, %v2010
        %v2067 = vpack.c.b16 %v2013, %v2011
        %v2068 = vpack.c.b16 %v2016, %v2014
        %v2069 = vpack.c.b16 %v2017, %v2015
        %v2070 = vpack.c.b16 %v2020, %v2018
        %v2071 = vpack.c.b16 %v2021, %v2019
        %v2072 = vpack.c.b16 %v2024, %v2022
        %v2073 = vpack.c.b16 %v2025, %v2023
        %v2074 = vpack.c.b16 %v2028, %v2026
        %v2075 = vpack.c.b16 %v2029, %v2027
        %v2076 = vpack.c.b16 %v2032, %v2030
        %v2077 = vpack.c.b16 %v2033, %v2031
        %v2078 = vpack.c.b16 %v2036, %v2034
        %v2079 = vpack.c.b16 %v2037, %v2035
        %v2080 = vpack.c.b16 %v2040, %v2038
        %v2081 = vpack.c.b16 %v2041, %v2039
        %v2082 = vpack.c.b16 %v2044, %v2042
        %v2083 = vpack.c.b16 %v2045, %v2043
        %v2084 = vpack.c.b16 %v2048, %v2046
        %v2085 = vpack.c.b16 %v2049, %v2047
        %v2086 = vpack.c.b16 %v2052, %v2050
        %v2087 = vpack.c.b16 %v2053, %v2051
        %v2088 = vpack.c.b16 %v2056, %v2054
        %v2089 = vpack.c.b16 %v2057, %v2055
        %2122 = vmatprep.subr.bf16.mxu0 %v2059
        %2123 = vmatpush1.bf16.msra.mxu0 %v2058
        %2124 = vmatprep.subr.bf16.mxu0 %v2061
        %2125 = vmatpush1.bf16.msra.mxu0 %v2060
        %2126 = vmatprep.subr.bf16.mxu0 %v2063
        %2127 = vmatpush1.bf16.msra.mxu0 %v2062
        %2128 = vmatprep.subr.bf16.mxu0 %v2065
        %2129 = vmatpush1.bf16.msra.mxu0 %v2064
        %2130 = vmatprep.subr.bf16.mxu0 %v2067
        %2131 = vmatpush1.bf16.msra.mxu0 %v2066
        %2132 = vmatprep.subr.bf16.mxu0 %v2069
        %2133 = vmatpush1.bf16.msra.mxu0 %v2068
        %2134 = vmatprep.subr.bf16.mxu0 %v2071
        %2135 = vmatpush1.bf16.msra.mxu0 %v2070
        %2136 = vmatprep.subr.bf16.mxu0 %v2073
        %2137 = vmatpush1.bf16.msra.mxu0 %v2072
        %2138 = vmatprep.subr.bf16.mxu0 %v2075
        %2139 = vmatpush1.bf16.msra.mxu0 %v2074
        %2140 = vmatprep.subr.bf16.mxu0 %v2077
        %2141 = vmatpush1.bf16.msra.mxu0 %v2076
        %2142 = vmatprep.subr.bf16.mxu0 %v2079
        %2143 = vmatpush1.bf16.msra.mxu0 %v2078
        %2144 = vmatprep.subr.bf16.mxu0 %v2081
        %2145 = vmatpush1.bf16.msra.mxu0 %v2080
        %2146 = vmatprep.subr.bf16.mxu0 %v2083
        %2147 = vmatpush1.bf16.msra.mxu0 %v2082
        %2148 = vmatprep.subr.bf16.mxu0 %v2085
        %2149 = vmatpush1.bf16.msra.mxu0 %v2084
        %2150 = vmatprep.subr.bf16.mxu0 %v2087
        %2151 = vmatpush1.bf16.msra.mxu0 %v2086
        %2152 = vmatprep.subr.bf16.mxu0 %v2089
        %2153 = vmatpush1.bf16.msra.mxu0 %v2088
        %2154 = vmatprep.mubr.bf16.mxu0 %v1959
        %2155 = vmatmul.mubr.bf16.gmra.mrb[0].mxu0 %v1942
        %v2156 = vpop.f32.mrb[0].mxu0
        %v2157 = vadd.f32 0.0, %v2156
        %v2158 = vpop.f32.mrb[0].mxu0
        %v2159 = vadd.f32 0.0, %v2158
        %v2160 = vpop.f32.mrb[0].mxu0
        %v2161 = vadd.f32 0.0, %v2160
        %v2162 = vpop.f32.mrb[0].mxu0
        %v2163 = vadd.f32 0.0, %v2162
        %2164 = vdwg.mxu0
        %v2165 = vadd.f32 %v1883, %v2157
        %v2166 = vadd.f32 %v1884, %v2159
        %v2167 = vadd.f32 %v1885, %v2161
        %v2168 = vadd.f32 %v1886, %v2163
        %v2169 = vld [vmem:[#allocation2] sm:$0x88]
        %s2170 = scalar_lea.vmem %s2, 1024
        %v2171 = vld [vmem:[%s2170] sm:$0xff]
        %v2172 = vld [vmem:[%s2170 + $0x8] sm:$0xff]
        %v2173 = vld [vmem:[%s2170 + $0x10] sm:$0xff]
        %v2174 = vld [vmem:[%s2170 + $0x18] sm:$0xff]
        %v2175 = vld [vmem:[%s2170 + $0x20] sm:$0xff]
        %v2176 = vld [vmem:[%s2170 + $0x28] sm:$0xff]
        %v2177 = vld [vmem:[%s2170 + $0x30] sm:$0xff]
        %v2178 = vld [vmem:[%s2170 + $0x38] sm:$0xff]
        %v2179 = vld [vmem:[%s2170 + $0x40] sm:$0xff]
        %v2180 = vld [vmem:[%s2170 + $0x48] sm:$0xff]
        %v2181 = vld [vmem:[%s2170 + $0x50] sm:$0xff]
        %v2182 = vld [vmem:[%s2170 + $0x58] sm:$0xff]
        %v2183 = vld [vmem:[%s2170 + $0x60] sm:$0xff]
        %v2184 = vld [vmem:[%s2170 + $0x68] sm:$0xff]
        %v2185 = vld [vmem:[%s2170 + $0x70] sm:$0xff]
        %v2186 = vld [vmem:[%s2170 + $0x78] sm:$0xff]
        %v2187 = vld [vmem:[%s2170 + $0x80] sm:$0xff]
        %v2188 = vld [vmem:[%s2170 + $0x88] sm:$0xff]
        %v2189 = vld [vmem:[%s2170 + $0x90] sm:$0xff]
        %v2190 = vld [vmem:[%s2170 + $0x98] sm:$0xff]
        %v2191 = vld [vmem:[%s2170 + $0xa0] sm:$0xff]
        %v2192 = vld [vmem:[%s2170 + $0xa8] sm:$0xff]
        %v2193 = vld [vmem:[%s2170 + $0xb0] sm:$0xff]
        %v2194 = vld [vmem:[%s2170 + $0xb8] sm:$0xff]
        %v2195 = vld [vmem:[%s2170 + $0xc0] sm:$0xff]
        %v2196 = vld [vmem:[%s2170 + $0xc8] sm:$0xff]
        %v2197 = vld [vmem:[%s2170 + $0xd0] sm:$0xff]
        %v2198 = vld [vmem:[%s2170 + $0xd8] sm:$0xff]
        %v2199 = vld [vmem:[%s2170 + $0xe0] sm:$0xff]
        %v2200 = vld [vmem:[%s2170 + $0xe8] sm:$0xff]
        %v2201 = vld [vmem:[%s2170 + $0xf0] sm:$0xff]
        %v2202 = vld [vmem:[%s2170 + $0xf8] sm:$0xff]
        %v2204 = vunpack.c.l.b16 %v2169
        %v2205 = vunpack.c.h.b16 %v2169
        %v2206 = vpack.c.b16 %v1404, %v2204
        %v2207 = vpack.c.b16 %v1405, %v2205
        %v2208 = vrot.slane %v2206, 3
        %v2209 = vrot.slane %v1924, 3
        %v2210 = vsel %vm715, %v2208, %v2209
        %v2211 = vrot.slane %v2207, 3
        %v2212 = vrot.slane %v1925, 3
        %v2213 = vsel %vm715, %v2211, %v2212
        %v2248 = vunpack.c.l.b16 %v2171
        %v2249 = vunpack.c.h.b16 %v2171
        %v2250 = vunpack.c.l.b16 %v2172
        %v2251 = vunpack.c.h.b16 %v2172
        %v2252 = vunpack.c.l.b16 %v2173
        %v2253 = vunpack.c.h.b16 %v2173
        %v2254 = vunpack.c.l.b16 %v2174
        %v2255 = vunpack.c.h.b16 %v2174
        %v2256 = vunpack.c.l.b16 %v2175
        %v2257 = vunpack.c.h.b16 %v2175
        %v2258 = vunpack.c.l.b16 %v2176
        %v2259 = vunpack.c.h.b16 %v2176
        %v2260 = vunpack.c.l.b16 %v2177
        %v2261 = vunpack.c.h.b16 %v2177
        %v2262 = vunpack.c.l.b16 %v2178
        %v2263 = vunpack.c.h.b16 %v2178
        %v2264 = vunpack.c.l.b16 %v2179
        %v2265 = vunpack.c.h.b16 %v2179
        %v2266 = vunpack.c.l.b16 %v2180
        %v2267 = vunpack.c.h.b16 %v2180
        %v2268 = vunpack.c.l.b16 %v2181
        %v2269 = vunpack.c.h.b16 %v2181
        %v2270 = vunpack.c.l.b16 %v2182
        %v2271 = vunpack.c.h.b16 %v2182
        %v2272 = vunpack.c.l.b16 %v2183
        %v2273 = vunpack.c.h.b16 %v2183
        %v2274 = vunpack.c.l.b16 %v2184
        %v2275 = vunpack.c.h.b16 %v2184
        %v2276 = vunpack.c.l.b16 %v2185
        %v2277 = vunpack.c.h.b16 %v2185
        %v2278 = vunpack.c.l.b16 %v2186
        %v2279 = vunpack.c.h.b16 %v2186
        %v2280 = vunpack.c.l.b16 %v2187
        %v2281 = vunpack.c.h.b16 %v2187
        %v2282 = vunpack.c.l.b16 %v2188
        %v2283 = vunpack.c.h.b16 %v2188
        %v2284 = vunpack.c.l.b16 %v2189
        %v2285 = vunpack.c.h.b16 %v2189
        %v2286 = vunpack.c.l.b16 %v2190
        %v2287 = vunpack.c.h.b16 %v2190
        %v2288 = vunpack.c.l.b16 %v2191
        %v2289 = vunpack.c.h.b16 %v2191
        %v2290 = vunpack.c.l.b16 %v2192
        %v2291 = vunpack.c.h.b16 %v2192
        %v2292 = vunpack.c.l.b16 %v2193
        %v2293 = vunpack.c.h.b16 %v2193
        %v2294 = vunpack.c.l.b16 %v2194
        %v2295 = vunpack.c.h.b16 %v2194
        %v2296 = vunpack.c.l.b16 %v2195
        %v2297 = vunpack.c.h.b16 %v2195
        %v2298 = vunpack.c.l.b16 %v2196
        %v2299 = vunpack.c.h.b16 %v2196
        %v2300 = vunpack.c.l.b16 %v2197
        %v2301 = vunpack.c.h.b16 %v2197
        %v2302 = vunpack.c.l.b16 %v2198
        %v2303 = vunpack.c.h.b16 %v2198
        %v2304 = vunpack.c.l.b16 %v2199
        %v2305 = vunpack.c.h.b16 %v2199
        %v2306 = vunpack.c.l.b16 %v2200
        %v2307 = vunpack.c.h.b16 %v2200
        %v2308 = vunpack.c.l.b16 %v2201
        %v2309 = vunpack.c.h.b16 %v2201
        %v2310 = vunpack.c.l.b16 %v2202
        %v2311 = vunpack.c.h.b16 %v2202
        %v2312 = vpack.c.b16 %v2250, %v2248
        %v2313 = vpack.c.b16 %v2251, %v2249
        %v2314 = vpack.c.b16 %v2254, %v2252
        %v2315 = vpack.c.b16 %v2255, %v2253
        %v2316 = vpack.c.b16 %v2258, %v2256
        %v2317 = vpack.c.b16 %v2259, %v2257
        %v2318 = vpack.c.b16 %v2262, %v2260
        %v2319 = vpack.c.b16 %v2263, %v2261
        %v2320 = vpack.c.b16 %v2266, %v2264
        %v2321 = vpack.c.b16 %v2267, %v2265
        %v2322 = vpack.c.b16 %v2270, %v2268
        %v2323 = vpack.c.b16 %v2271, %v2269
        %v2324 = vpack.c.b16 %v2274, %v2272
        %v2325 = vpack.c.b16 %v2275, %v2273
        %v2326 = vpack.c.b16 %v2278, %v2276
        %v2327 = vpack.c.b16 %v2279, %v2277
        %v2328 = vpack.c.b16 %v2282, %v2280
        %v2329 = vpack.c.b16 %v2283, %v2281
        %v2330 = vpack.c.b16 %v2286, %v2284
        %v2331 = vpack.c.b16 %v2287, %v2285
        %v2332 = vpack.c.b16 %v2290, %v2288
        %v2333 = vpack.c.b16 %v2291, %v2289
        %v2334 = vpack.c.b16 %v2294, %v2292
        %v2335 = vpack.c.b16 %v2295, %v2293
        %v2336 = vpack.c.b16 %v2298, %v2296
        %v2337 = vpack.c.b16 %v2299, %v2297
        %v2338 = vpack.c.b16 %v2302, %v2300
        %v2339 = vpack.c.b16 %v2303, %v2301
        %v2340 = vpack.c.b16 %v2306, %v2304
        %v2341 = vpack.c.b16 %v2307, %v2305
        %v2342 = vpack.c.b16 %v2310, %v2308
        %v2343 = vpack.c.b16 %v2311, %v2309
        %2376 = vmatprep.subr.bf16.mxu0 %v2313
        %2377 = vmatpush1.bf16.msra.mxu0 %v2312
        %2378 = vmatprep.subr.bf16.mxu0 %v2315
        %2379 = vmatpush1.bf16.msra.mxu0 %v2314
        %2380 = vmatprep.subr.bf16.mxu0 %v2317
        %2381 = vmatpush1.bf16.msra.mxu0 %v2316
        %2382 = vmatprep.subr.bf16.mxu0 %v2319
        %2383 = vmatpush1.bf16.msra.mxu0 %v2318
        %2384 = vmatprep.subr.bf16.mxu0 %v2321
        %2385 = vmatpush1.bf16.msra.mxu0 %v2320
        %2386 = vmatprep.subr.bf16.mxu0 %v2323
        %2387 = vmatpush1.bf16.msra.mxu0 %v2322
        %2388 = vmatprep.subr.bf16.mxu0 %v2325
        %2389 = vmatpush1.bf16.msra.mxu0 %v2324
        %2390 = vmatprep.subr.bf16.mxu0 %v2327
        %2391 = vmatpush1.bf16.msra.mxu0 %v2326
        %2392 = vmatprep.subr.bf16.mxu0 %v2329
        %2393 = vmatpush1.bf16.msra.mxu0 %v2328
        %2394 = vmatprep.subr.bf16.mxu0 %v2331
        %2395 = vmatpush1.bf16.msra.mxu0 %v2330
        %2396 = vmatprep.subr.bf16.mxu0 %v2333
        %2397 = vmatpush1.bf16.msra.mxu0 %v2332
        %2398 = vmatprep.subr.bf16.mxu0 %v2335
        %2399 = vmatpush1.bf16.msra.mxu0 %v2334
        %2400 = vmatprep.subr.bf16.mxu0 %v2337
        %2401 = vmatpush1.bf16.msra.mxu0 %v2336
        %2402 = vmatprep.subr.bf16.mxu0 %v2339
        %2403 = vmatpush1.bf16.msra.mxu0 %v2338
        %2404 = vmatprep.subr.bf16.mxu0 %v2341
        %2405 = vmatpush1.bf16.msra.mxu0 %v2340
        %2406 = vmatprep.subr.bf16.mxu0 %v2343
        %2407 = vmatpush1.bf16.msra.mxu0 %v2342
        %2408 = vmatprep.mubr.bf16.mxu0 %v2213
        %2409 = vmatmul.mubr.bf16.gmra.mrb[0].mxu0 %v2210
        %v2410 = vpop.f32.mrb[0].mxu0
        %v2411 = vadd.f32 0.0, %v2410
        %v2412 = vpop.f32.mrb[0].mxu0
        %v2413 = vadd.f32 0.0, %v2412
        %v2414 = vpop.f32.mrb[0].mxu0
        %v2415 = vadd.f32 0.0, %v2414
        %v2416 = vpop.f32.mrb[0].mxu0
        %v2417 = vadd.f32 0.0, %v2416
        %2418 = vdwg.mxu0
        %v2419 = vadd.f32 %v2165, %v2411
        %v2420 = vadd.f32 %v2166, %v2413
        %v2421 = vadd.f32 %v2167, %v2415
        %v2422 = vadd.f32 %v2168, %v2417
        %v2423 = vld [vmem:[#allocation2 + $0x10] sm:$0xff]
        %s2424 = scalar_lea.vmem %s2, 1280
        %v2425 = vld [vmem:[%s2424] sm:$0xff]
        %v2426 = vld [vmem:[%s2424 + $0x8] sm:$0xff]
        %v2427 = vld [vmem:[%s2424 + $0x10] sm:$0xff]
        %v2428 = vld [vmem:[%s2424 + $0x18] sm:$0xff]
        %v2429 = vld [vmem:[%s2424 + $0x20] sm:$0xff]
        %v2430 = vld [vmem:[%s2424 + $0x28] sm:$0xff]
        %v2431 = vld [vmem:[%s2424 + $0x30] sm:$0xff]
        %v2432 = vld [vmem:[%s2424 + $0x38] sm:$0xff]
        %v2433 = vld [vmem:[%s2424 + $0x40] sm:$0xff]
        %v2434 = vld [vmem:[%s2424 + $0x48] sm:$0xff]
        %v2435 = vld [vmem:[%s2424 + $0x50] sm:$0xff]
        %v2436 = vld [vmem:[%s2424 + $0x58] sm:$0xff]
        %v2437 = vld [vmem:[%s2424 + $0x60] sm:$0xff]
        %v2438 = vld [vmem:[%s2424 + $0x68] sm:$0xff]
        %v2439 = vld [vmem:[%s2424 + $0x70] sm:$0xff]
        %v2440 = vld [vmem:[%s2424 + $0x78] sm:$0xff]
        %v2441 = vld [vmem:[%s2424 + $0x80] sm:$0xff]
        %v2442 = vld [vmem:[%s2424 + $0x88] sm:$0xff]
        %v2443 = vld [vmem:[%s2424 + $0x90] sm:$0xff]
        %v2444 = vld [vmem:[%s2424 + $0x98] sm:$0xff]
        %v2445 = vld [vmem:[%s2424 + $0xa0] sm:$0xff]
        %v2446 = vld [vmem:[%s2424 + $0xa8] sm:$0xff]
        %v2447 = vld [vmem:[%s2424 + $0xb0] sm:$0xff]
        %v2448 = vld [vmem:[%s2424 + $0xb8] sm:$0xff]
        %v2449 = vld [vmem:[%s2424 + $0xc0] sm:$0xff]
        %v2450 = vld [vmem:[%s2424 + $0xc8] sm:$0xff]
        %v2451 = vld [vmem:[%s2424 + $0xd0] sm:$0xff]
        %v2452 = vld [vmem:[%s2424 + $0xd8] sm:$0xff]
        %v2453 = vld [vmem:[%s2424 + $0xe0] sm:$0xff]
        %v2454 = vld [vmem:[%s2424 + $0xe8] sm:$0xff]
        %v2455 = vld [vmem:[%s2424 + $0xf0] sm:$0xff]
        %v2456 = vld [vmem:[%s2424 + $0xf8] sm:$0xff]
        %v2458 = vunpack.c.l.b16 %v2423
        %v2459 = vunpack.c.h.b16 %v2423
        %v2460 = vpack.c.b16 %v2458, %v1404
        %v2461 = vpack.c.b16 %v2459, %v1405
        %v2496 = vunpack.c.l.b16 %v2425
        %v2497 = vunpack.c.h.b16 %v2425
        %v2498 = vunpack.c.l.b16 %v2426
        %v2499 = vunpack.c.h.b16 %v2426
        %v2500 = vunpack.c.l.b16 %v2427
        %v2501 = vunpack.c.h.b16 %v2427
        %v2502 = vunpack.c.l.b16 %v2428
        %v2503 = vunpack.c.h.b16 %v2428
        %v2504 = vunpack.c.l.b16 %v2429
        %v2505 = vunpack.c.h.b16 %v2429
        %v2506 = vunpack.c.l.b16 %v2430
        %v2507 = vunpack.c.h.b16 %v2430
        %v2508 = vunpack.c.l.b16 %v2431
        %v2509 = vunpack.c.h.b16 %v2431
        %v2510 = vunpack.c.l.b16 %v2432
        %v2511 = vunpack.c.h.b16 %v2432
        %v2512 = vunpack.c.l.b16 %v2433
        %v2513 = vunpack.c.h.b16 %v2433
        %v2514 = vunpack.c.l.b16 %v2434
        %v2515 = vunpack.c.h.b16 %v2434
        %v2516 = vunpack.c.l.b16 %v2435
        %v2517 = vunpack.c.h.b16 %v2435
        %v2518 = vunpack.c.l.b16 %v2436
        %v2519 = vunpack.c.h.b16 %v2436
        %v2520 = vunpack.c.l.b16 %v2437
        %v2521 = vunpack.c.h.b16 %v2437
        %v2522 = vunpack.c.l.b16 %v2438
        %v2523 = vunpack.c.h.b16 %v2438
        %v2524 = vunpack.c.l.b16 %v2439
        %v2525 = vunpack.c.h.b16 %v2439
        %v2526 = vunpack.c.l.b16 %v2440
        %v2527 = vunpack.c.h.b16 %v2440
        %v2528 = vunpack.c.l.b16 %v2441
        %v2529 = vunpack.c.h.b16 %v2441
        %v2530 = vunpack.c.l.b16 %v2442
        %v2531 = vunpack.c.h.b16 %v2442
        %v2532 = vunpack.c.l.b16 %v2443
        %v2533 = vunpack.c.h.b16 %v2443
        %v2534 = vunpack.c.l.b16 %v2444
        %v2535 = vunpack.c.h.b16 %v2444
        %v2536 = vunpack.c.l.b16 %v2445
        %v2537 = vunpack.c.h.b16 %v2445
        %v2538 = vunpack.c.l.b16 %v2446
        %v2539 = vunpack.c.h.b16 %v2446
        %v2540 = vunpack.c.l.b16 %v2447
        %v2541 = vunpack.c.h.b16 %v2447
        %v2542 = vunpack.c.l.b16 %v2448
        %v2543 = vunpack.c.h.b16 %v2448
        %v2544 = vunpack.c.l.b16 %v2449
        %v2545 = vunpack.c.h.b16 %v2449
        %v2546 = vunpack.c.l.b16 %v2450
        %v2547 = vunpack.c.h.b16 %v2450
        %v2548 = vunpack.c.l.b16 %v2451
        %v2549 = vunpack.c.h.b16 %v2451
        %v2550 = vunpack.c.l.b16 %v2452
        %v2551 = vunpack.c.h.b16 %v2452
        %v2552 = vunpack.c.l.b16 %v2453
        %v2553 = vunpack.c.h.b16 %v2453
        %v2554 = vunpack.c.l.b16 %v2454
        %v2555 = vunpack.c.h.b16 %v2454
        %v2556 = vunpack.c.l.b16 %v2455
        %v2557 = vunpack.c.h.b16 %v2455
        %v2558 = vunpack.c.l.b16 %v2456
        %v2559 = vunpack.c.h.b16 %v2456
        %v2560 = vpack.c.b16 %v2498, %v2496
        %v2561 = vpack.c.b16 %v2499, %v2497
        %v2562 = vpack.c.b16 %v2502, %v2500
        %v2563 = vpack.c.b16 %v2503, %v2501
        %v2564 = vpack.c.b16 %v2506, %v2504
        %v2565 = vpack.c.b16 %v2507, %v2505
        %v2566 = vpack.c.b16 %v2510, %v2508
        %v2567 = vpack.c.b16 %v2511, %v2509
        %v2568 = vpack.c.b16 %v2514, %v2512
        %v2569 = vpack.c.b16 %v2515, %v2513
        %v2570 = vpack.c.b16 %v2518, %v2516
        %v2571 = vpack.c.b16 %v2519, %v2517
        %v2572 = vpack.c.b16 %v2522, %v2520
        %v2573 = vpack.c.b16 %v2523, %v2521
        %v2574 = vpack.c.b16 %v2526, %v2524
        %v2575 = vpack.c.b16 %v2527, %v2525
        %v2576 = vpack.c.b16 %v2530, %v2528
        %v2577 = vpack.c.b16 %v2531, %v2529
        %v2578 = vpack.c.b16 %v2534, %v2532
        %v2579 = vpack.c.b16 %v2535, %v2533
        %v2580 = vpack.c.b16 %v2538, %v2536
        %v2581 = vpack.c.b16 %v2539, %v2537
        %v2582 = vpack.c.b16 %v2542, %v2540
        %v2583 = vpack.c.b16 %v2543, %v2541
        %v2584 = vpack.c.b16 %v2546, %v2544
        %v2585 = vpack.c.b16 %v2547, %v2545
        %v2586 = vpack.c.b16 %v2550, %v2548
        %v2587 = vpack.c.b16 %v2551, %v2549
        %v2588 = vpack.c.b16 %v2554, %v2552
        %v2589 = vpack.c.b16 %v2555, %v2553
        %v2590 = vpack.c.b16 %v2558, %v2556
        %v2591 = vpack.c.b16 %v2559, %v2557
        %2624 = vmatprep.subr.bf16.mxu0 %v2561
        %2625 = vmatpush1.bf16.msra.mxu0 %v2560
        %2626 = vmatprep.subr.bf16.mxu0 %v2563
        %2627 = vmatpush1.bf16.msra.mxu0 %v2562
        %2628 = vmatprep.subr.bf16.mxu0 %v2565
        %2629 = vmatpush1.bf16.msra.mxu0 %v2564
        %2630 = vmatprep.subr.bf16.mxu0 %v2567
        %2631 = vmatpush1.bf16.msra.mxu0 %v2566
        %2632 = vmatprep.subr.bf16.mxu0 %v2569
        %2633 = vmatpush1.bf16.msra.mxu0 %v2568
        %2634 = vmatprep.subr.bf16.mxu0 %v2571
        %2635 = vmatpush1.bf16.msra.mxu0 %v2570
        %2636 = vmatprep.subr.bf16.mxu0 %v2573
        %2637 = vmatpush1.bf16.msra.mxu0 %v2572
        %2638 = vmatprep.subr.bf16.mxu0 %v2575
        %2639 = vmatpush1.bf16.msra.mxu0 %v2574
        %2640 = vmatprep.subr.bf16.mxu0 %v2577
        %2641 = vmatpush1.bf16.msra.mxu0 %v2576
        %2642 = vmatprep.subr.bf16.mxu0 %v2579
        %2643 = vmatpush1.bf16.msra.mxu0 %v2578
        %2644 = vmatprep.subr.bf16.mxu0 %v2581
        %2645 = vmatpush1.bf16.msra.mxu0 %v2580
        %2646 = vmatprep.subr.bf16.mxu0 %v2583
        %2647 = vmatpush1.bf16.msra.mxu0 %v2582
        %2648 = vmatprep.subr.bf16.mxu0 %v2585
        %2649 = vmatpush1.bf16.msra.mxu0 %v2584
        %2650 = vmatprep.subr.bf16.mxu0 %v2587
        %2651 = vmatpush1.bf16.msra.mxu0 %v2586
        %2652 = vmatprep.subr.bf16.mxu0 %v2589
        %2653 = vmatpush1.bf16.msra.mxu0 %v2588
        %2654 = vmatprep.subr.bf16.mxu0 %v2591
        %2655 = vmatpush1.bf16.msra.mxu0 %v2590
        %2656 = vmatprep.mubr.bf16.mxu0 %v2461
        %2657 = vmatmul.mubr.bf16.gmra.mrb[0].mxu0 %v2460
        %v2658 = vpop.f32.mrb[0].mxu0
        %v2659 = vadd.f32 0.0, %v2658
        %v2660 = vpop.f32.mrb[0].mxu0
        %v2661 = vadd.f32 0.0, %v2660
        %v2662 = vpop.f32.mrb[0].mxu0
        %v2663 = vadd.f32 0.0, %v2662
        %v2664 = vpop.f32.mrb[0].mxu0
        %v2665 = vadd.f32 0.0, %v2664
        %2666 = vdwg.mxu0
        %v2667 = vadd.f32 %v2419, %v2659
        %v2668 = vadd.f32 %v2420, %v2661
        %v2669 = vadd.f32 %v2421, %v2663
        %v2670 = vadd.f32 %v2422, %v2665
        %v2671 = vld [vmem:[#allocation2 + $0x8] sm:$0xee]
        %v2672 = vld [vmem:[#allocation2 + $0x10] sm:$0xff]
        %v2673 = vld [vmem:[#allocation2 + $0x18] sm:$0x11]
        %s2674 = scalar_lea.vmem %s2, 1536
        %v2675 = vld [vmem:[%s2674] sm:$0xff]
        %v2676 = vld [vmem:[%s2674 + $0x8] sm:$0xff]
        %v2677 = vld [vmem:[%s2674 + $0x10] sm:$0xff]
        %v2678 = vld [vmem:[%s2674 + $0x18] sm:$0xff]
        %v2679 = vld [vmem:[%s2674 + $0x20] sm:$0xff]
        %v2680 = vld [vmem:[%s2674 + $0x28] sm:$0xff]
        %v2681 = vld [vmem:[%s2674 + $0x30] sm:$0xff]
        %v2682 = vld [vmem:[%s2674 + $0x38] sm:$0xff]
        %v2683 = vld [vmem:[%s2674 + $0x40] sm:$0xff]
        %v2684 = vld [vmem:[%s2674 + $0x48] sm:$0xff]
        %v2685 = vld [vmem:[%s2674 + $0x50] sm:$0xff]
        %v2686 = vld [vmem:[%s2674 + $0x58] sm:$0xff]
        %v2687 = vld [vmem:[%s2674 + $0x60] sm:$0xff]
        %v2688 = vld [vmem:[%s2674 + $0x68] sm:$0xff]
        %v2689 = vld [vmem:[%s2674 + $0x70] sm:$0xff]
        %v2690 = vld [vmem:[%s2674 + $0x78] sm:$0xff]
        %v2691 = vld [vmem:[%s2674 + $0x80] sm:$0xff]
        %v2692 = vld [vmem:[%s2674 + $0x88] sm:$0xff]
        %v2693 = vld [vmem:[%s2674 + $0x90] sm:$0xff]
        %v2694 = vld [vmem:[%s2674 + $0x98] sm:$0xff]
        %v2695 = vld [vmem:[%s2674 + $0xa0] sm:$0xff]
        %v2696 = vld [vmem:[%s2674 + $0xa8] sm:$0xff]
        %v2697 = vld [vmem:[%s2674 + $0xb0] sm:$0xff]
        %v2698 = vld [vmem:[%s2674 + $0xb8] sm:$0xff]
        %v2699 = vld [vmem:[%s2674 + $0xc0] sm:$0xff]
        %v2700 = vld [vmem:[%s2674 + $0xc8] sm:$0xff]
        %v2701 = vld [vmem:[%s2674 + $0xd0] sm:$0xff]
        %v2702 = vld [vmem:[%s2674 + $0xd8] sm:$0xff]
        %v2703 = vld [vmem:[%s2674 + $0xe0] sm:$0xff]
        %v2704 = vld [vmem:[%s2674 + $0xe8] sm:$0xff]
        %v2705 = vld [vmem:[%s2674 + $0xf0] sm:$0xff]
        %v2706 = vld [vmem:[%s2674 + $0xf8] sm:$0xff]
        %v2710 = vunpack.c.l.b16 %v2671
        %v2711 = vunpack.c.h.b16 %v2671
        %v2712 = vunpack.c.l.b16 %v2672
        %v2713 = vunpack.c.h.b16 %v2672
        %v2714 = vunpack.c.l.b16 %v2673
        %v2715 = vunpack.c.h.b16 %v2673
        %v2716 = vpack.c.b16 %v2712, %v2710
        %v2717 = vpack.c.b16 %v2713, %v2711
        %v2718 = vpack.c.b16 %v2714, %v2714
        %v2719 = vpack.c.b16 %v2715, %v2715
        %v2720 = vrot.slane %v2716, 1
        %v2721 = vrot.slane %v2718, 1
        %v2722 = vsel %vm376, %v2720, %v2721
        %v2723 = vrot.slane %v2717, 1
        %v2724 = vrot.slane %v2719, 1
        %v2725 = vsel %vm376, %v2723, %v2724
        %v2760 = vunpack.c.l.b16 %v2675
        %v2761 = vunpack.c.h.b16 %v2675
        %v2762 = vunpack.c.l.b16 %v2676
        %v2763 = vunpack.c.h.b16 %v2676
        %v2764 = vunpack.c.l.b16 %v2677
        %v2765 = vunpack.c.h.b16 %v2677
        %v2766 = vunpack.c.l.b16 %v2678
        %v2767 = vunpack.c.h.b16 %v2678
        %v2768 = vunpack.c.l.b16 %v2679
        %v2769 = vunpack.c.h.b16 %v2679
        %v2770 = vunpack.c.l.b16 %v2680
        %v2771 = vunpack.c.h.b16 %v2680
        %v2772 = vunpack.c.l.b16 %v2681
        %v2773 = vunpack.c.h.b16 %v2681
        %v2774 = vunpack.c.l.b16 %v2682
        %v2775 = vunpack.c.h.b16 %v2682
        %v2776 = vunpack.c.l.b16 %v2683
        %v2777 = vunpack.c.h.b16 %v2683
        %v2778 = vunpack.c.l.b16 %v2684
        %v2779 = vunpack.c.h.b16 %v2684
        %v2780 = vunpack.c.l.b16 %v2685
        %v2781 = vunpack.c.h.b16 %v2685
        %v2782 = vunpack.c.l.b16 %v2686
        %v2783 = vunpack.c.h.b16 %v2686
        %v2784 = vunpack.c.l.b16 %v2687
        %v2785 = vunpack.c.h.b16 %v2687
        %v2786 = vunpack.c.l.b16 %v2688
        %v2787 = vunpack.c.h.b16 %v2688
        %v2788 = vunpack.c.l.b16 %v2689
        %v2789 = vunpack.c.h.b16 %v2689
        %v2790 = vunpack.c.l.b16 %v2690
        %v2791 = vunpack.c.h.b16 %v2690
        %v2792 = vunpack.c.l.b16 %v2691
        %v2793 = vunpack.c.h.b16 %v2691
        %v2794 = vunpack.c.l.b16 %v2692
        %v2795 = vunpack.c.h.b16 %v2692
        %v2796 = vunpack.c.l.b16 %v2693
        %v2797 = vunpack.c.h.b16 %v2693
        %v2798 = vunpack.c.l.b16 %v2694
        %v2799 = vunpack.c.h.b16 %v2694
        %v2800 = vunpack.c.l.b16 %v2695
        %v2801 = vunpack.c.h.b16 %v2695
        %v2802 = vunpack.c.l.b16 %v2696
        %v2803 = vunpack.c.h.b16 %v2696
        %v2804 = vunpack.c.l.b16 %v2697
        %v2805 = vunpack.c.h.b16 %v2697
        %v2806 = vunpack.c.l.b16 %v2698
        %v2807 = vunpack.c.h.b16 %v2698
        %v2808 = vunpack.c.l.b16 %v2699
        %v2809 = vunpack.c.h.b16 %v2699
        %v2810 = vunpack.c.l.b16 %v2700
        %v2811 = vunpack.c.h.b16 %v2700
        %v2812 = vunpack.c.l.b16 %v2701
        %v2813 = vunpack.c.h.b16 %v2701
        %v2814 = vunpack.c.l.b16 %v2702
        %v2815 = vunpack.c.h.b16 %v2702
        %v2816 = vunpack.c.l.b16 %v2703
        %v2817 = vunpack.c.h.b16 %v2703
        %v2818 = vunpack.c.l.b16 %v2704
        %v2819 = vunpack.c.h.b16 %v2704
        %v2820 = vunpack.c.l.b16 %v2705
        %v2821 = vunpack.c.h.b16 %v2705
        %v2822 = vunpack.c.l.b16 %v2706
        %v2823 = vunpack.c.h.b16 %v2706
        %v2824 = vpack.c.b16 %v2762, %v2760
        %v2825 = vpack.c.b16 %v2763, %v2761
        %v2826 = vpack.c.b16 %v2766, %v2764
        %v2827 = vpack.c.b16 %v2767, %v2765
        %v2828 = vpack.c.b16 %v2770, %v2768
        %v2829 = vpack.c.b16 %v2771, %v2769
        %v2830 = vpack.c.b16 %v2774, %v2772
        %v2831 = vpack.c.b16 %v2775, %v2773
        %v2832 = vpack.c.b16 %v2778, %v2776
        %v2833 = vpack.c.b16 %v2779, %v2777
        %v2834 = vpack.c.b16 %v2782, %v2780
        %v2835 = vpack.c.b16 %v2783, %v2781
        %v2836 = vpack.c.b16 %v2786, %v2784
        %v2837 = vpack.c.b16 %v2787, %v2785
        %v2838 = vpack.c.b16 %v2790, %v2788
        %v2839 = vpack.c.b16 %v2791, %v2789
        %v2840 = vpack.c.b16 %v2794, %v2792
        %v2841 = vpack.c.b16 %v2795, %v2793
        %v2842 = vpack.c.b16 %v2798, %v2796
        %v2843 = vpack.c.b16 %v2799, %v2797
        %v2844 = vpack.c.b16 %v2802, %v2800
        %v2845 = vpack.c.b16 %v2803, %v2801
        %v2846 = vpack.c.b16 %v2806, %v2804
        %v2847 = vpack.c.b16 %v2807, %v2805
        %v2848 = vpack.c.b16 %v2810, %v2808
        %v2849 = vpack.c.b16 %v2811, %v2809
        %v2850 = vpack.c.b16 %v2814, %v2812
        %v2851 = vpack.c.b16 %v2815, %v2813
        %v2852 = vpack.c.b16 %v2818, %v2816
        %v2853 = vpack.c.b16 %v2819, %v2817
        %v2854 = vpack.c.b16 %v2822, %v2820
        %v2855 = vpack.c.b16 %v2823, %v2821
        %2888 = vmatprep.subr.bf16.mxu0 %v2825
        %2889 = vmatpush1.bf16.msra.mxu0 %v2824
        %2890 = vmatprep.subr.bf16.mxu0 %v2827
        %2891 = vmatpush1.bf16.msra.mxu0 %v2826
        %2892 = vmatprep.subr.bf16.mxu0 %v2829
        %2893 = vmatpush1.bf16.msra.mxu0 %v2828
        %2894 = vmatprep.subr.bf16.mxu0 %v2831
        %2895 = vmatpush1.bf16.msra.mxu0 %v2830
        %2896 = vmatprep.subr.bf16.mxu0 %v2833
        %2897 = vmatpush1.bf16.msra.mxu0 %v2832
        %2898 = vmatprep.subr.bf16.mxu0 %v2835
        %2899 = vmatpush1.bf16.msra.mxu0 %v2834
        %2900 = vmatprep.subr.bf16.mxu0 %v2837
        %2901 = vmatpush1.bf16.msra.mxu0 %v2836
        %2902 = vmatprep.subr.bf16.mxu0 %v2839
        %2903 = vmatpush1.bf16.msra.mxu0 %v2838
        %2904 = vmatprep.subr.bf16.mxu0 %v2841
        %2905 = vmatpush1.bf16.msra.mxu0 %v2840
        %2906 = vmatprep.subr.bf16.mxu0 %v2843
        %2907 = vmatpush1.bf16.msra.mxu0 %v2842
        %2908 = vmatprep.subr.bf16.mxu0 %v2845
        %2909 = vmatpush1.bf16.msra.mxu0 %v2844
        %2910 = vmatprep.subr.bf16.mxu0 %v2847
        %2911 = vmatpush1.bf16.msra.mxu0 %v2846
        %2912 = vmatprep.subr.bf16.mxu0 %v2849
        %2913 = vmatpush1.bf16.msra.mxu0 %v2848
        %2914 = vmatprep.subr.bf16.mxu0 %v2851
        %2915 = vmatpush1.bf16.msra.mxu0 %v2850
        %2916 = vmatprep.subr.bf16.mxu0 %v2853
        %2917 = vmatpush1.bf16.msra.mxu0 %v2852
        %2918 = vmatprep.subr.bf16.mxu0 %v2855
        %2919 = vmatpush1.bf16.msra.mxu0 %v2854
        %2920 = vmatprep.mubr.bf16.mxu0 %v2725
        %2921 = vmatmul.mubr.bf16.gmra.mrb[0].mxu0 %v2722
        %v2922 = vpop.f32.mrb[0].mxu0
        %v2923 = vadd.f32 0.0, %v2922
        %v2924 = vpop.f32.mrb[0].mxu0
        %v2925 = vadd.f32 0.0, %v2924
        %v2926 = vpop.f32.mrb[0].mxu0
        %v2927 = vadd.f32 0.0, %v2926
        %v2928 = vpop.f32.mrb[0].mxu0
        %v2929 = vadd.f32 0.0, %v2928
        %2930 = vdwg.mxu0
        %v2931 = vadd.f32 %v2667, %v2923
        %v2932 = vadd.f32 %v2668, %v2925
        %v2933 = vadd.f32 %v2669, %v2927
        %v2934 = vadd.f32 %v2670, %v2929
        %2939 = vrot.lane.b32.xlu0 %v2931, 64
        %v2940 = vpop.permute.xlu0 %2939
        %2941 = vrot.lane.b32.xlu0 %v2932, 64
        %v2942 = vpop.permute.xlu0 %2941
        %2943 = vrot.lane.b32.xlu0 %v2933, 64
        %v2944 = vpop.permute.xlu0 %2943
        %2945 = vrot.lane.b32.xlu0 %v2934, 64
        %v2946 = vpop.permute.xlu0 %2945
        %v2947 = vsel %vm305, %v2940, %v2942
        %v2948 = vsel %vm305, %v2944, %v2946
        %vm2953 = vcmask 1048064
        %2954 = vst.msk [vmem:[%s217 + $0x8] sm:$0xff] %vm2953, %v2940
        %2955 = vst [vmem:[%s217 + $0x10] sm:$0xff] %v2947
        %2956 = vst.msk [vmem:[%s217 + $0x20] sm:$0xff] %vm2953, %v2944
        %2957 = vst [vmem:[%s217 + $0x28] sm:$0xff] %v2948
        %s2958 = sand.u32 %s137, 1
        %s2959 = scalar_lea.sflag [#allocation4], %s2958
        %s2960 = sand.u32 %s137, 1
        %s2961 = smul.addr %s2960, 48
        %s2962 = scalar_lea.vmem [#allocation3], %s2961
        // Predicated region
        $region41: #{tpu_custom_call.1} parent=39 // pred_check
          %p2963 = pneg %p147
        $region42: #{tpu_custom_call.1} parent=39 // pred_check_branch
          %2965 = sbr.rel (%p2963) target = $region44
        $region43: #{tpu_custom_call.1} parent=39 // pred_region
          %s2967 = ssub.s32 768, 768
          %2968 = vsyncadd %s2959, %s2967
          %s2969 = smul.addr %s19, 6
          %s2970 = smul.addr %s2969, 128
          %s2971 = scalar_lea.hbm %s5, %s2970
          %s2972 = sshll.u32 %s2962, 4
          %s2973 = int_to_ptr.vmem [resolvable:$true] %s2972
          %2978 = dma.vmem_to_hbm [thread:$0]  %s2973, 768, %s2971, %s2959, 384, 384, 24
        $region44: #{tpu_custom_call.1} parent=39 // pred_fallthru
          _
      $region40: #{tpu_custom_call.1} parent=5 // pred_fallthru
        _
      %p2979 = scmp.le.s32.totalorder 2, %s14
      // Predicated region
      $region45: #{tpu_custom_call.1} parent=5 // pred_check
        %p2980 = pneg %p2979
      $region46: #{tpu_custom_call.1} parent=5 // pred_check_branch
        %2982 = sbr.rel (%p2980) target = $region48
      $region47: #{tpu_custom_call.1} parent=5 // pred_region
        %s2983 = ssub.s32 %s14, 2
        // Predicated region
        $region49: #{tpu_custom_call.1} parent=47 // pred_check
          %p2984 = pneg %p153
        $region50: #{tpu_custom_call.1} parent=47 // pred_check_branch
          %2986 = sbr.rel (%p2984) target = $region52
        $region51: #{tpu_custom_call.1} parent=47 // pred_region
          %s2987 = sand.u32 %s138, 1
          %s2988 = scalar_lea.sflag [#allocation4], %s2987
          %s2989 = sand.u32 %s138, 1
          %s2990 = smul.addr %s2989, 48
          %s2991 = scalar_lea.vmem [#allocation3], %s2990
          %2992 = dma.done %s2988, 768
        $region52: #{tpu_custom_call.1} parent=47 // pred_fallthru
          _
      $region48: #{tpu_custom_call.1} parent=5 // pred_fallthru
        _
    $region6: #{tpu_custom_call.1} parent=1 // loop_footer
      %s18 = sadd.s32 1, %s14
    $region7: #{tpu_custom_call.1} parent=1 // loop_footer_branch
      %13 = sbr.rel target = $region3
    $region8: #{tpu_custom_call.1} parent=1 // loop_exit
      _
    %2993 = vsyncpa [#allocation4], 1
    %s2994 = scalar_lea.sflag [#allocation4], 1
    %2995 = vsyncpa %s2994, 1

</llo_original>
